<compile_context>
chip_gen: v6e
topology: v6e:2x2x1
jax: 0.10.0
libtpu: 0.0.40
codegen_flags: <defaults>
</compile_context>

<pallas_src>
import functools
import math

import jax
import jax.numpy as jnp
from jax.experimental import pallas as pl
from jax.experimental.pallas import tpu as pltpu


BBOX_XFORM_CLIP = math.log(1000.0 / 16.0)   # maskrcnn_benchmark clamp on dw/dh

BBOX_REG_WEIGHTS = (
    (10.0, 10.0, 5.0, 5.0),
    (20.0, 20.0, 10.0, 10.0),
    (30.0, 30.0, 15.0, 15.0),
)


def _round_up(x, m):
    return ((x + m - 1) // m) * m


# ---------------------------------------------------------------------------
# Fused Pallas kernel: MLP feature extractor + combined predictor + box decode
# ---------------------------------------------------------------------------
def make_head_kernel(ncp, nbp, reg_weights, img_h, img_w, want_feat):
    wx, wy, ww_, wh_ = (float(v) for v in reg_weights)
    img_h = float(img_h)
    img_w = float(img_w)

    def kernel(x_ref, boxes_ref, w6_ref, b6_ref, w7_ref, b7_ref,
               wp_ref, bp_ref, *out_refs):
        if want_feat:
            feat_ref, pred_ref, dec_ref = out_refs
        else:
            pred_ref, dec_ref = out_refs

        # --- fc6 / fc7 (bf16 operands, f32 accumulation) ---
        x = x_ref[...]                                               # [TM, F] bf16
        h = jnp.dot(x, w6_ref[...], preferred_element_type=jnp.float32) + b6_ref[...]
        h = jnp.maximum(h, 0.0)
        h = jnp.dot(h.astype(jnp.bfloat16), w7_ref[...],
                    preferred_element_type=jnp.float32) + b7_ref[...]
        h = jnp.maximum(h, 0.0)                                      # [TM, H] f32
        if want_feat:
            feat_ref[...] = h.astype(feat_ref.dtype)                 # bf16 writeback

        # --- single padded predictor matmul:
        #     lanes [0:ncp) = cls (padded), lanes [ncp:ncp+nbp) = box reg (padded)
        p = jnp.dot(h.astype(jnp.bfloat16), wp_ref[...],
                    preferred_element_type=jnp.float32) + bp_ref[...]  # [TM, NPW]
        pred_ref[...] = p                                            # lane-dense store

        # --- vectorized BoxCoder.decode on the 128-aligned regression slab ---
        rb = p[:, ncp:ncp + nbp]                                     # [TM, NBP], aligned

        lane = jax.lax.broadcasted_iota(jnp.int32, (1, nbp), 1)
        m = lane & 3                       # 0:dx/x1  1:dy/y1  2:dw/x2  3:dh/y2
        is_ctr = m < 2                     # lanes producing x1'/y1'
        is_x = (m & 1) == 0                # x-like lanes (x1', x2')

        inv_w = jnp.where(m == 0, 1.0 / wx,
                jnp.where(m == 1, 1.0 / wy,
                jnp.where(m == 2, 1.0 / ww_, 1.0 / wh_)))            # [1, NBP]
        ds = rb * inv_w                                              # [TM, NBP]

        bx = boxes_ref[...].astype(jnp.float32)                      # [TM, 4]
        x1 = bx[:, 0:1]
        y1 = bx[:, 1:2]
        x2 = bx[:, 2:3]
        y2 = bx[:, 3:4]
        bw = x2 - x1 + 1.0                                           # TO_REMOVE = 1
        bh = y2 - y1 + 1.0
        cx = x1 + 0.5 * bw
        cy = y1 + 0.5 * bh

        size = jnp.where(is_x, bw, bh)                               # [TM, NBP]
        ctr0 = jnp.where(is_x, cx, cy)
        lim = jnp.where(is_x, img_w - 1.0, img_h - 1.0)              # [1, NBP]

        # Align dx/dy onto the x2'/y2' lanes and dw/dh onto the x1'/y1' lanes
        # with two cheap XLU lane rotations (period-4 lane pattern).
        dctr = jnp.where(is_ctr, ds, pltpu.roll(ds, shift=2, axis=1))
        dsz = jnp.where(is_ctr, pltpu.roll(ds, shift=nbp - 2, axis=1), ds)
        dsz = jnp.minimum(dsz, BBOX_XFORM_CLIP)

        ctr = dctr * size + ctr0
        half = 0.5 * jnp.exp(dsz) * size
        val = jnp.where(is_ctr, ctr - half, ctr + half - 1.0)
        dec_ref[...] = jnp.clip(val, 0.0, lim)                       # lane-dense store

    return kernel


# ---------------------------------------------------------------------------
# Parameter preparation: bf16 weights, combined lane-aligned predictor weight
# ---------------------------------------------------------------------------
def prepare_stage_params(p):
    wc, wb = p["wc"], p["wb"]
    hdim = wc.shape[0]
    nc, nb = wc.shape[1], wb.shape[1]
    ncp = _round_up(nc, 128)
    nbp = _round_up(nb, 128)
    npw = ncp + nbp
    wp = jnp.zeros((hdim, npw), jnp.float32)
    wp = wp.at[:, :nc].set(wc).at[:, ncp:ncp + nb].set(wb)
    bp = jnp.zeros((1, npw), jnp.float32)
    bp = bp.at[:, :nc].set(p["bc"].reshape(1, -1))
    bp = bp.at[:, ncp:ncp + nb].set(p["bb"].reshape(1, -1))
    return dict(
        w6=p["w6"].astype(jnp.bfloat16),
        b6=p["b6"].reshape(1, -1).astype(jnp.float32),
        w7=p["w7"].astype(jnp.bfloat16),
        b7=p["b7"].reshape(1, -1).astype(jnp.float32),
        wp=wp.astype(jnp.bfloat16),
        bp=bp,
        nc=nc, nb=nb, ncp=ncp, nbp=nbp,
    )


# ---------------------------------------------------------------------------
# Pallas call wrapper: tiled over the ROI dimension, weights resident
# ---------------------------------------------------------------------------
def fused_head(pooled, boxes, prep, *, reg_weights, img_h, img_w, want_feat):
    R, F = pooled.shape
    nc, nb, ncp, nbp = prep["nc"], prep["nb"], prep["ncp"], prep["nbp"]
    H = prep["w6"].shape[1]
    NPW = ncp + nbp

    wgt_bytes = sum(int(a.size) * a.dtype.itemsize
                    for a in (prep["w6"], prep["b6"], prep["w7"], prep["b7"],
                              prep["wp"], prep["bp"]))

    def blk_bytes(tm):
        return (tm * F * 2            # pooled (bf16)
                + tm * 4 * 4          # boxes
                + tm * NPW * 4        # predictor out
                + tm * nbp * 4        # decoded out
                + (tm * H * 2 if want_feat else 0))   # feat out (bf16)

    # TM=256 feeds the 256-wide MXU on v6e/v7x; gate it on a conservative
    # VMEM budget so it never blows v7x's 64 MiB.  TM=128 otherwise.
    if R >= 256 and 2 * wgt_bytes + 3 * blk_bytes(256) + (8 << 20) <= (48 << 20):
        TM = 256
    elif R >= 128:
        TM = 128
    else:
        TM = _round_up(max(R, 1), 16)
    RP = _round_up(R, TM)

    pooled_p = jnp.pad(pooled.astype(jnp.bfloat16), ((0, RP - R), (0, 0)))
    boxes_p = jnp.pad(boxes.astype(jnp.float32), ((0, RP - R), (0, 0)))

    def row_map(i):
        return (i, 0)

    def rep_map(i):
        return (0, 0)

    # TODO(synk): at real maskrcnn sizes (F=256*7*7, H=1024) single-buffer the
    # weights (pl.Buffered(1)) or K-tile w6 so the resident footprint fits
    # v7x's 64 MiB VMEM per TensorCore.
    in_specs = [
        pl.BlockSpec((TM, F), row_map),
        pl.BlockSpec((TM, 4), row_map),
        pl.BlockSpec(prep["w6"].shape, rep_map),
        pl.BlockSpec(prep["b6"].shape, rep_map),
        pl.BlockSpec(prep["w7"].shape, rep_map),
        pl.BlockSpec(prep["b7"].shape, rep_map),
        pl.BlockSpec(prep["wp"].shape, rep_map),
        pl.BlockSpec(prep["bp"].shape, rep_map),
    ]
    out_specs = []
    out_shape = []
    if want_feat:
        out_specs.append(pl.BlockSpec((TM, H), row_map))
        out_shape.append(jax.ShapeDtypeStruct((RP, H), jnp.bfloat16))
    out_specs.append(pl.BlockSpec((TM, NPW), row_map))
    out_shape.append(jax.ShapeDtypeStruct((RP, NPW), jnp.float32))
    out_specs.append(pl.BlockSpec((TM, nbp), row_map))
    out_shape.append(jax.ShapeDtypeStruct((RP, nbp), jnp.float32))

    # Scoped-VMEM budget: blocks double/triple buffered + resident weights +
    # slack, capped at 56 MiB so it is always safe on v7x (64 MiB physical).
    need = 2 * wgt_bytes + 3 * blk_bytes(TM) + (4 << 20)
    vmem_bytes = int(min(56 << 20, max(32 << 20, need)))

    kernel = make_head_kernel(ncp, nbp, reg_weights, img_h, img_w, want_feat)
    outs = pl.pallas_call(
        kernel,
        grid=(RP // TM,),
        in_specs=in_specs,
        out_specs=tuple(out_specs),
        out_shape=tuple(out_shape),
        compiler_params=pltpu.CompilerParams(
            dimension_semantics=("parallel",),
            vmem_limit_bytes=vmem_bytes),
    )(pooled_p, boxes_p, prep["w6"], prep["b6"], prep["w7"], prep["b7"],
      prep["wp"], prep["bp"])

    if want_feat:
        feat, pred, dec = outs
        feat = feat[:R]
    else:
        pred, dec = outs
        feat = None
    pred = pred[:R]
    dec = dec[:R, :nb]                    # drop lane padding
    cls = pred[:, :nc]
    reg = pred[:, ncp:ncp + nb]
    return feat, cls, reg, dec


# ---------------------------------------------------------------------------
# ROIAlign (sampling_ratio=1 bin centers), gather-free separable formulation:
# pooled[r,c,p,q] = sum_{h,w} Wy[r,p,h] * feat[c,h,w] * Wx[r,q,w]
# ---------------------------------------------------------------------------
def roi_align(feat_chw, boxes, spatial_scale, pooled_size):
    # TODO(synk): at real feature-map sizes chunk over ROIs (lax.map) or fold
    # these separable matmuls into the fused head kernel to remove the pooled
    # tensor's HBM round trip; at the test scale the einsums are negligible.
    C, H, W = feat_chw.shape
    b = boxes.astype(jnp.float32) * spatial_scale
    x1, y1, x2, y2 = b[:, 0], b[:, 1], b[:, 2], b[:, 3]
    roi_w = jnp.maximum(x2 - x1, 1.0)
    roi_h = jnp.maximum(y2 - y1, 1.0)
    idx = (jnp.arange(pooled_size, dtype=jnp.float32) + 0.5) / pooled_size
    ys = jnp.clip(y1[:, None] + idx[None, :] * roi_h[:, None], 0.0, H - 1.0)
    xs = jnp.clip(x1[:, None] + idx[None, :] * roi_w[:, None], 0.0, W - 1.0)
    hh = jnp.arange(H, dtype=jnp.float32)
    ww = jnp.arange(W, dtype=jnp.float32)
    wy = jnp.maximum(0.0, 1.0 - jnp.abs(ys[:, :, None] - hh[None, None, :]))  # [R,P,H]
    wx = jnp.maximum(0.0, 1.0 - jnp.abs(xs[:, :, None] - ww[None, None, :]))  # [R,P,W]
    tmp = jnp.einsum('rph,chw->rpcw', wy, feat_chw)
    pooled = jnp.einsum('rpcw,rqw->rcpq', tmp, wx)                             # [R,C,P,P]
    return pooled.astype(jnp.bfloat16)    # bf16 halves the HBM hand-off


# ---------------------------------------------------------------------------
# ROIBoxCascadeHead forward (eval mode: returns (x_ori, result, {}))
# ---------------------------------------------------------------------------
def roi_box_cascade_head_forward(features, proposals, params, *,
                                 spatial_scale, pooled_size, img_h, img_w):
    # TODO(synk): for tiny per-image R all three stages (+ ROIAlign) could be
    # fused into one pallas_call with all stage weights resident.
    feat_chw = features[0][0]                 # single image, single level [C,H,W]
    R = proposals.shape[0]
    nc = params["stage3"]["wc"].shape[1]

    prep1 = prepare_stage_params(params["stage1"])
    prep2 = prepare_stage_params(params["stage2"])
    prep3 = prepare_stage_params(params["stage3"])

    fg1 = 1 if prep1["nb"] >= 8 else 0        # class-agnostic: foreground deltas
    fg2 = 1 if prep2["nb"] >= 8 else 0

    # --- cascade stage 1 ---
    pooled = roi_align(feat_chw, proposals, spatial_scale, pooled_size).reshape(R, -1)
    x_ori, _l1, _r1, dec1 = fused_head(
        pooled, proposals, prep1, reg_weights=BBOX_REG_WEIGHTS[0],
        img_h=img_h, img_w=img_w, want_feat=True)
    prop2 = dec1[:, 4 * fg1:4 * fg1 + 4]

    # --- cascade stage 2 ---
    pooled = roi_align(feat_chw, prop2, spatial_scale, pooled_size).reshape(R, -1)
    _, _l2, _r2, dec2 = fused_head(
        pooled, prop2, prep2, reg_weights=BBOX_REG_WEIGHTS[1],
        img_h=img_h, img_w=img_w, want_feat=False)
    prop3 = dec2[:, 4 * fg2:4 * fg2 + 4]

    # --- final stage + post_processor(final_iter=True) decode ---
    pooled = roi_align(feat_chw, prop3, spatial_scale, pooled_size).reshape(R, -1)
    _, logits3, _r3, dec3 = fused_head(
        pooled, prop3, prep3, reg_weights=BBOX_REG_WEIGHTS[2],
        img_h=img_h, img_w=img_w, want_feat=False)

    scores = jax.nn.softmax(logits3, axis=-1)
    decoded = dec3.reshape(R, nc, 4)
    # TODO(synk): per-class NMS / score thresholding of the PostProcessor is
    # data-dependent selection with no clean Pallas equivalent; we return the
    # per-class decoded boxes + softmax scores instead.
    result = (decoded, scores)
    return x_ori, result, {}


# ---------------------------------------------------------------------------
# Deterministic parameter init (shapes follow FPN2MLPFeatureExtractor + predictors)
# ---------------------------------------------------------------------------
def init_stage_params(key, in_feat, rep, num_cls, num_box):
    ks = jax.random.split(key, 4)
    return dict(
        w6=jax.random.normal(ks[0], (in_feat, rep), jnp.float32) * 0.01,
        b6=jnp.zeros((1, rep), jnp.float32),
        w7=jax.random.normal(ks[1], (rep, rep), jnp.float32) * 0.01,
        b7=jnp.zeros((1, rep), jnp.float32),
        wc=jax.random.normal(ks[2], (rep, num_cls), jnp.float32) * 0.01,
        bc=jnp.zeros((1, num_cls), jnp.float32),
        wb=jax.random.normal(ks[3], (rep, num_box), jnp.float32) * 0.001,
        bb=jnp.zeros((1, num_box), jnp.float32),
    )


if __name__ == "__main__":
    key = jax.random.PRNGKey(0)
    kf, kb1, kb2, k1, k2, k3 = jax.random.split(key, 6)

    # small config
    C, HF, WF = 16, 16, 16          # feature map channels / spatial
    IMG = 64                        # image size (pixels)
    SPATIAL_SCALE = HF / IMG        # 0.25
    P = 4                           # pooled ROI resolution
    R = 8                           # number of proposals
    REP = 128                       # MLP hidden (representation) size
    NUM_CLASSES = 4                 # incl. background

    features = [jax.random.normal(kf, (1, C, HF, WF), jnp.float32)]   # NCHW
    xy = jax.random.uniform(kb1, (R, 2), minval=0.0, maxval=IMG / 2.0)
    wh = jax.random.uniform(kb2, (R, 2), minval=8.0, maxval=IMG / 2.0)
    proposals = jnp.concatenate([xy, jnp.minimum(xy + wh, IMG - 1.0)], axis=-1)

    in_feat = C * P * P
    params = dict(
        stage1=init_stage_params(k1, in_feat, REP, NUM_CLASSES, 2 * 4),           # class-agnostic
        stage2=init_stage_params(k2, in_feat, REP, NUM_CLASSES, 2 * 4),           # class-agnostic
        stage3=init_stage_params(k3, in_feat, REP, NUM_CLASSES, NUM_CLASSES * 4), # per-class
    )

    fwd = jax.jit(functools.partial(
        roi_box_cascade_head_forward,
        spatial_scale=SPATIAL_SCALE, pooled_size=P, img_h=IMG, img_w=IMG))

    x_ori, (boxes, scores), losses = fwd(features, proposals, params)

    jax.block_until_ready((x_ori, boxes, scores))
    assert x_ori.shape == (R, REP)
    assert boxes.shape == (R, NUM_CLASSES, 4)
    assert scores.shape == (R, NUM_CLASSES)
    assert losses == {}
    assert bool(jnp.all(jnp.isfinite(boxes))) and bool(jnp.all(jnp.isfinite(scores)))
    print("KERNEL_OK")
</pallas_src>

<mosaic_0001>
module attributes {stable_mosaic.version = 11 : i64} {
  func.func @kernel(%arg0: i32, %arg1: memref<16x256xbf16, #tpu.memory_space<vmem>>, %arg2: memref<16x4xf32, #tpu.memory_space<vmem>>, %arg3: memref<256x128xbf16, #tpu.memory_space<vmem>>, %arg4: memref<1x128xf32, #tpu.memory_space<vmem>>, %arg5: memref<128x128xbf16, #tpu.memory_space<vmem>>, %arg6: memref<1x128xf32, #tpu.memory_space<vmem>>, %arg7: memref<128x256xbf16, #tpu.memory_space<vmem>>, %arg8: memref<1x256xf32, #tpu.memory_space<vmem>>, %arg9: memref<16x128xbf16, #tpu.memory_space<vmem>>, %arg10: memref<16x256xf32, #tpu.memory_space<vmem>>, %arg11: memref<16x128xf32, #tpu.memory_space<vmem>>) attributes {dimension_semantics = [#tpu.dimension_semantics<parallel>], iteration_bounds = array<i64: 1>, scalar_prefetch = 0 : i64, scratch_operands = 0 : i64, tpu.core_type = #tpu.core_type<tc>, window_params = [{transform_indices = @transform_0, window_bounds = array<i64: 16, 256>}, {transform_indices = @transform_1, window_bounds = array<i64: 16, 4>}, {pipeline_mode = #tpu.pipeline_mode<synchronous>, transform_indices = @transform_2, window_bounds = array<i64: 256, 128>}, {pipeline_mode = #tpu.pipeline_mode<synchronous>, transform_indices = @transform_3, window_bounds = array<i64: 1, 128>}, {pipeline_mode = #tpu.pipeline_mode<synchronous>, transform_indices = @transform_4, window_bounds = array<i64: 128, 128>}, {pipeline_mode = #tpu.pipeline_mode<synchronous>, transform_indices = @transform_5, window_bounds = array<i64: 1, 128>}, {pipeline_mode = #tpu.pipeline_mode<synchronous>, transform_indices = @transform_6, window_bounds = array<i64: 128, 256>}, {pipeline_mode = #tpu.pipeline_mode<synchronous>, transform_indices = @transform_7, window_bounds = array<i64: 1, 256>}, {transform_indices = @transform_8, window_bounds = array<i64: 16, 128>}, {transform_indices = @transform_9, window_bounds = array<i64: 16, 256>}, {transform_indices = @transform_10, window_bounds = array<i64: 16, 128>}]} {
    %c0 = arith.constant 0 : index
    %c0_0 = arith.constant 0 : index
    %0 = vector.load %arg1[%c0, %c0_0] : memref<16x256xbf16, #tpu.memory_space<vmem>>, vector<16x256xbf16>
    %c0_1 = arith.constant 0 : index
    %c0_2 = arith.constant 0 : index
    %1 = vector.load %arg3[%c0_1, %c0_2] : memref<256x128xbf16, #tpu.memory_space<vmem>>, vector<256x128xbf16>
    %cst = arith.constant dense<0.000000e+00> : vector<16x128xf32>
    %2 = tpu.matmul %0, %1, %cst {dimension_numbers = #tpu.dot_dimension_numbers<[1], [0], [0], [1], [0, 0, 1, 1], [], []>} : vector<16x256xbf16>, vector<256x128xbf16>, vector<16x128xf32> -> vector<16x128xf32>
    %c0_3 = arith.constant 0 : index
    %c0_4 = arith.constant 0 : index
    %3 = vector.load %arg4[%c0_3, %c0_4] : memref<1x128xf32, #tpu.memory_space<vmem>>, vector<1x128xf32>
    %4 = vector.broadcast %3 : vector<1x128xf32> to vector<16x128xf32>
    %5 = arith.addf %2, %4 : vector<16x128xf32>
    %cst_5 = arith.constant 0.000000e+00 : f32
    %6 = vector.broadcast %cst_5 : f32 to vector<16x128xf32>
    %7 = arith.maximumf %5, %6 : vector<16x128xf32>
    %8 = arith.truncf %7 : vector<16x128xf32> to vector<16x128xbf16>
    %c0_6 = arith.constant 0 : index
    %c0_7 = arith.constant 0 : index
    %9 = vector.load %arg5[%c0_6, %c0_7] : memref<128x128xbf16, #tpu.memory_space<vmem>>, vector<128x128xbf16>
    %cst_8 = arith.constant dense<0.000000e+00> : vector<16x128xf32>
    %10 = tpu.matmul %8, %9, %cst_8 {dimension_numbers = #tpu.dot_dimension_numbers<[1], [0], [0], [1], [0, 0, 1, 1], [], []>} : vector<16x128xbf16>, vector<128x128xbf16>, vector<16x128xf32> -> vector<16x128xf32>
    %c0_9 = arith.constant 0 : index
    %c0_10 = arith.constant 0 : index
    %11 = vector.load %arg6[%c0_9, %c0_10] : memref<1x128xf32, #tpu.memory_space<vmem>>, vector<1x128xf32>
    %12 = vector.broadcast %11 : vector<1x128xf32> to vector<16x128xf32>
    %13 = arith.addf %10, %12 : vector<16x128xf32>
    %cst_11 = arith.constant 0.000000e+00 : f32
    %14 = vector.broadcast %cst_11 : f32 to vector<16x128xf32>
    %15 = arith.maximumf %13, %14 : vector<16x128xf32>
    %16 = arith.truncf %15 : vector<16x128xf32> to vector<16x128xbf16>
    %c0_12 = arith.constant 0 : index
    %c0_13 = arith.constant 0 : index
    %17 = vector.load %arg9[%c0_12, %c0_13] : memref<16x128xbf16, #tpu.memory_space<vmem>>, vector<16x128xbf16>
    tpu.vector_store %arg9[%c0_12, %c0_13], %16 {strides = array<i32>} : memref<16x128xbf16, #tpu.memory_space<vmem>>, vector<16x128xbf16>,
    %18 = arith.truncf %15 : vector<16x128xf32> to vector<16x128xbf16>
    %c0_14 = arith.constant 0 : index
    %c0_15 = arith.constant 0 : index
    %19 = vector.load %arg7[%c0_14, %c0_15] : memref<128x256xbf16, #tpu.memory_space<vmem>>, vector<128x256xbf16>
    %cst_16 = arith.constant dense<0.000000e+00> : vector<16x256xf32>
    %20 = tpu.matmul %18, %19, %cst_16 {dimension_numbers = #tpu.dot_dimension_numbers<[1], [0], [0], [1], [0, 0, 1, 1], [], []>} : vector<16x128xbf16>, vector<128x256xbf16>, vector<16x256xf32> -> vector<16x256xf32>
    %c0_17 = arith.constant 0 : index
    %c0_18 = arith.constant 0 : index
    %21 = vector.load %arg8[%c0_17, %c0_18] : memref<1x256xf32, #tpu.memory_space<vmem>>, vector<1x256xf32>
    %22 = vector.broadcast %21 : vector<1x256xf32> to vector<16x256xf32>
    %23 = arith.addf %20, %22 : vector<16x256xf32>
    %c0_19 = arith.constant 0 : index
    %c0_20 = arith.constant 0 : index
    %24 = vector.load %arg10[%c0_19, %c0_20] : memref<16x256xf32, #tpu.memory_space<vmem>>, vector<16x256xf32>
    tpu.vector_store %arg10[%c0_19, %c0_20], %23 {strides = array<i32>} : memref<16x256xf32, #tpu.memory_space<vmem>>, vector<16x256xf32>,
    %25 = vector.extract_strided_slice %23 {offsets = [0, 128], sizes = [16, 128], strides = [1, 1]} : vector<16x256xf32> to vector<16x128xf32>
    %26 = tpu.iota {dimensions = array<i32: 1>} : vector<1x128xi32>
    %c3_i32 = arith.constant 3 : i32
    %27 = vector.broadcast %c3_i32 : i32 to vector<1x128xi32>
    %28 = arith.andi %26, %27 : vector<1x128xi32>
    %c2_i32 = arith.constant 2 : i32
    %29 = vector.broadcast %c2_i32 : i32 to vector<1x128xi32>
    %30 = arith.cmpi slt, %28, %29 : vector<1x128xi32>
    %c1_i32 = arith.constant 1 : i32
    %31 = vector.broadcast %c1_i32 : i32 to vector<1x128xi32>
    %32 = arith.andi %28, %31 : vector<1x128xi32>
    %c0_i32 = arith.constant 0 : i32
    %33 = vector.broadcast %c0_i32 : i32 to vector<1x128xi32>
    %34 = arith.cmpi eq, %32, %33 : vector<1x128xi32>
    %c0_i32_21 = arith.constant 0 : i32
    %35 = vector.broadcast %c0_i32_21 : i32 to vector<1x128xi32>
    %36 = arith.cmpi eq, %28, %35 : vector<1x128xi32>
    %c1_i32_22 = arith.constant 1 : i32
    %37 = vector.broadcast %c1_i32_22 : i32 to vector<1x128xi32>
    %38 = arith.cmpi eq, %28, %37 : vector<1x128xi32>
    %c2_i32_23 = arith.constant 2 : i32
    %39 = vector.broadcast %c2_i32_23 : i32 to vector<1x128xi32>
    %40 = arith.cmpi eq, %28, %39 : vector<1x128xi32>
    %cst_24 = arith.constant 2.000000e-01 : f32
    %cst_25 = arith.constant 2.000000e-01 : f32
    %41 = vector.broadcast %cst_24 : f32 to vector<1x128xf32>
    %42 = vector.broadcast %cst_25 : f32 to vector<1x128xf32>
    %43 = arith.select %40, %41, %42 : vector<1x128xi1>, vector<1x128xf32>
    %cst_26 = arith.constant 1.000000e-01 : f32
    %44 = vector.broadcast %cst_26 : f32 to vector<1x128xf32>
    %45 = arith.select %38, %44, %43 : vector<1x128xi1>, vector<1x128xf32>
    %cst_27 = arith.constant 1.000000e-01 : f32
    %46 = vector.broadcast %cst_27 : f32 to vector<1x128xf32>
    %47 = arith.select %36, %46, %45 : vector<1x128xi1>, vector<1x128xf32>
    %48 = vector.broadcast %47 : vector<1x128xf32> to vector<16x128xf32>
    %49 = arith.mulf %25, %48 : vector<16x128xf32>
    %c0_28 = arith.constant 0 : index
    %c0_29 = arith.constant 0 : index
    %50 = vector.load %arg2[%c0_28, %c0_29] : memref<16x4xf32, #tpu.memory_space<vmem>>, vector<16x4xf32>
    %51 = vector.extract_strided_slice %50 {offsets = [0, 0], sizes = [16, 1], strides = [1, 1]} : vector<16x4xf32> to vector<16x1xf32>
    %52 = vector.extract_strided_slice %50 {offsets = [0, 1], sizes = [16, 1], strides = [1, 1]} : vector<16x4xf32> to vector<16x1xf32>
    %53 = vector.extract_strided_slice %50 {offsets = [0, 2], sizes = [16, 1], strides = [1, 1]} : vector<16x4xf32> to vector<16x1xf32>
    %54 = vector.extract_strided_slice %50 {offsets = [0, 3], sizes = [16, 1], strides = [1, 1]} : vector<16x4xf32> to vector<16x1xf32>
    %55 = arith.subf %53, %51 : vector<16x1xf32>
    %cst_30 = arith.constant 1.000000e+00 : f32
    %56 = vector.broadcast %cst_30 : f32 to vector<16x1xf32>
    %57 = arith.addf %55, %56 : vector<16x1xf32>
    %58 = arith.subf %54, %52 : vector<16x1xf32>
    %cst_31 = arith.constant 1.000000e+00 : f32
    %59 = vector.broadcast %cst_31 : f32 to vector<16x1xf32>
    %60 = arith.addf %58, %59 : vector<16x1xf32>
    %cst_32 = arith.constant 5.000000e-01 : f32
    %61 = vector.broadcast %cst_32 : f32 to vector<16x1xf32>
    %62 = arith.mulf %61, %57 : vector<16x1xf32>
    %63 = arith.addf %51, %62 : vector<16x1xf32>
    %cst_33 = arith.constant 5.000000e-01 : f32
    %64 = vector.broadcast %cst_33 : f32 to vector<16x1xf32>
    %65 = arith.mulf %64, %60 : vector<16x1xf32>
    %66 = arith.addf %52, %65 : vector<16x1xf32>
    %67 = vector.shape_cast %34 : vector<1x128xi1> to vector<1x128xi1>
    %68 = vector.broadcast %67 : vector<1x128xi1> to vector<16x128xi1>
    %69 = vector.shape_cast %57 : vector<16x1xf32> to vector<16x1xf32>
    %70 = vector.broadcast %69 : vector<16x1xf32> to vector<16x128xf32>
    %71 = vector.shape_cast %60 : vector<16x1xf32> to vector<16x1xf32>
    %72 = vector.broadcast %71 : vector<16x1xf32> to vector<16x128xf32>
    %73 = arith.select %68, %70, %72 : vector<16x128xi1>, vector<16x128xf32>
    %74 = vector.shape_cast %34 : vector<1x128xi1> to vector<1x128xi1>
    %75 = vector.broadcast %74 : vector<1x128xi1> to vector<16x128xi1>
    %76 = vector.shape_cast %63 : vector<16x1xf32> to vector<16x1xf32>
    %77 = vector.broadcast %76 : vector<16x1xf32> to vector<16x128xf32>
    %78 = vector.shape_cast %66 : vector<16x1xf32> to vector<16x1xf32>
    %79 = vector.broadcast %78 : vector<16x1xf32> to vector<16x128xf32>
    %80 = arith.select %75, %77, %79 : vector<16x128xi1>, vector<16x128xf32>
    %cst_34 = arith.constant 6.300000e+01 : f32
    %cst_35 = arith.constant 6.300000e+01 : f32
    %81 = vector.broadcast %cst_34 : f32 to vector<1x128xf32>
    %82 = vector.broadcast %cst_35 : f32 to vector<1x128xf32>
    %83 = arith.select %34, %81, %82 : vector<1x128xi1>, vector<1x128xf32>
    %c2_i32_36 = arith.constant 2 : i32
    %84 = tpu.dynamic_rotate %49 by %c2_i32_36 dim 1 : vector<16x128xf32>, i32 -> vector<16x128xf32>
    %85 = vector.shape_cast %30 : vector<1x128xi1> to vector<1x128xi1>
    %86 = vector.broadcast %85 : vector<1x128xi1> to vector<16x128xi1>
    %87 = arith.select %86, %49, %84 : vector<16x128xi1>, vector<16x128xf32>
    %c126_i32 = arith.constant 126 : i32
    %88 = tpu.dynamic_rotate %49 by %c126_i32 dim 1 : vector<16x128xf32>, i32 -> vector<16x128xf32>
    %89 = vector.shape_cast %30 : vector<1x128xi1> to vector<1x128xi1>
    %90 = vector.broadcast %89 : vector<1x128xi1> to vector<16x128xi1>
    %91 = arith.select %90, %88, %49 : vector<16x128xi1>, vector<16x128xf32>
    %cst_37 = arith.constant 4.13516665 : f32
    %92 = vector.broadcast %cst_37 : f32 to vector<16x128xf32>
    %93 = arith.minimumf %91, %92 : vector<16x128xf32>
    %94 = arith.mulf %87, %73 : vector<16x128xf32>
    %95 = arith.addf %94, %80 : vector<16x128xf32>
    %96 = math.exp %93 : vector<16x128xf32>
    %cst_38 = arith.constant 5.000000e-01 : f32
    %97 = vector.broadcast %cst_38 : f32 to vector<16x128xf32>
    %98 = arith.mulf %97, %96 : vector<16x128xf32>
    %99 = arith.mulf %98, %73 : vector<16x128xf32>
    %100 = arith.subf %95, %99 : vector<16x128xf32>
    %101 = arith.addf %95, %99 : vector<16x128xf32>
    %cst_39 = arith.constant 1.000000e+00 : f32
    %102 = vector.broadcast %cst_39 : f32 to vector<16x128xf32>
    %103 = arith.subf %101, %102 : vector<16x128xf32>
    %104 = vector.shape_cast %30 : vector<1x128xi1> to vector<1x128xi1>
    %105 = vector.broadcast %104 : vector<1x128xi1> to vector<16x128xi1>
    %106 = arith.select %105, %100, %103 : vector<16x128xi1>, vector<16x128xf32>
    %cst_40 = arith.constant 0.000000e+00 : f32
    %107 = vector.broadcast %cst_40 : f32 to vector<16x128xf32>
    %108 = arith.maximumf %107, %106 : vector<16x128xf32>
    %109 = vector.broadcast %83 : vector<1x128xf32> to vector<16x128xf32>
    %110 = arith.minimumf %109, %108 : vector<16x128xf32>
    %c0_41 = arith.constant 0 : index
    %c0_42 = arith.constant 0 : index
    %111 = vector.load %arg11[%c0_41, %c0_42] : memref<16x128xf32, #tpu.memory_space<vmem>>, vector<16x128xf32>
    tpu.vector_store %arg11[%c0_41, %c0_42], %110 {strides = array<i32>} : memref<16x128xf32, #tpu.memory_space<vmem>>, vector<16x128xf32>,
    return
  }
  func.func @transform_0(%arg0: i32) -> (i32, i32) {
    %c0_i32 = arith.constant 0 : i32
    %c0_i32_0 = arith.constant 0 : i32
    return %arg0, %c0_i32 : i32, i32
  }
  func.func @transform_1(%arg0: i32) -> (i32, i32) {
    %c0_i32 = arith.constant 0 : i32
    %c0_i32_0 = arith.constant 0 : i32
    return %arg0, %c0_i32 : i32, i32
  }
  func.func @transform_2(%arg0: i32) -> (i32, i32) {
    %c0_i32 = arith.constant 0 : i32
    %c0_i32_0 = arith.constant 0 : i32
    %c0_i32_1 = arith.constant 0 : i32
    return %c0_i32, %c0_i32_0 : i32, i32
  }
  func.func @transform_3(%arg0: i32) -> (i32, i32) {
    %c0_i32 = arith.constant 0 : i32
    %c0_i32_0 = arith.constant 0 : i32
    %c0_i32_1 = arith.constant 0 : i32
    return %c0_i32, %c0_i32_0 : i32, i32
  }
  func.func @transform_4(%arg0: i32) -> (i32, i32) {
    %c0_i32 = arith.constant 0 : i32
    %c0_i32_0 = arith.constant 0 : i32
    %c0_i32_1 = arith.constant 0 : i32
    return %c0_i32, %c0_i32_0 : i32, i32
  }
  func.func @transform_5(%arg0: i32) -> (i32, i32) {
    %c0_i32 = arith.constant 0 : i32
    %c0_i32_0 = arith.constant 0 : i32
    %c0_i32_1 = arith.constant 0 : i32
    return %c0_i32, %c0_i32_0 : i32, i32
  }
  func.func @transform_6(%arg0: i32) -> (i32, i32) {
    %c0_i32 = arith.constant 0 : i32
    %c0_i32_0 = arith.constant 0 : i32
    %c0_i32_1 = arith.constant 0 : i32
    return %c0_i32, %c0_i32_0 : i32, i32
  }
  func.func @transform_7(%arg0: i32) -> (i32, i32) {
    %c0_i32 = arith.constant 0 : i32
    %c0_i32_0 = arith.constant 0 : i32
    %c0_i32_1 = arith.constant 0 : i32
    return %c0_i32, %c0_i32_0 : i32, i32
  }
  func.func @transform_8(%arg0: i32) -> (i32, i32) {
    %c0_i32 = arith.constant 0 : i32
    %c0_i32_0 = arith.constant 0 : i32
    return %arg0, %c0_i32 : i32, i32
  }
  func.func @transform_9(%arg0: i32) -> (i32, i32) {
    %c0_i32 = arith.constant 0 : i32
    %c0_i32_0 = arith.constant 0 : i32
    return %arg0, %c0_i32 : i32, i32
  }
  func.func @transform_10(%arg0: i32) -> (i32, i32) {
    %c0_i32 = arith.constant 0 : i32
    %c0_i32_0 = arith.constant 0 : i32
    return %arg0, %c0_i32 : i32, i32
  }
}

module attributes {stable_mosaic.version = 11 : i64} {
  func.func @kernel(%arg0: i32, %arg1: memref<16x256xbf16, #tpu.memory_space<vmem>>, %arg2: memref<16x4xf32, #tpu.memory_space<vmem>>, %arg3: memref<256x128xbf16, #tpu.memory_space<vmem>>, %arg4: memref<1x128xf32, #tpu.memory_space<vmem>>, %arg5: memref<128x128xbf16, #tpu.memory_space<vmem>>, %arg6: memref<1x128xf32, #tpu.memory_space<vmem>>, %arg7: memref<128x256xbf16, #tpu.memory_space<vmem>>, %arg8: memref<1x256xf32, #tpu.memory_space<vmem>>, %arg9: memref<16x256xf32, #tpu.memory_space<vmem>>, %arg10: memref<16x128xf32, #tpu.memory_space<vmem>>) attributes {dimension_semantics = [#tpu.dimension_semantics<parallel>], iteration_bounds = array<i64: 1>, scalar_prefetch = 0 : i64, scratch_operands = 0 : i64, tpu.core_type = #tpu.core_type<tc>, window_params = [{transform_indices = @transform_0, window_bounds = array<i64: 16, 256>}, {transform_indices = @transform_1, window_bounds = array<i64: 16, 4>}, {pipeline_mode = #tpu.pipeline_mode<synchronous>, transform_indices = @transform_2, window_bounds = array<i64: 256, 128>}, {pipeline_mode = #tpu.pipeline_mode<synchronous>, transform_indices = @transform_3, window_bounds = array<i64: 1, 128>}, {pipeline_mode = #tpu.pipeline_mode<synchronous>, transform_indices = @transform_4, window_bounds = array<i64: 128, 128>}, {pipeline_mode = #tpu.pipeline_mode<synchronous>, transform_indices = @transform_5, window_bounds = array<i64: 1, 128>}, {pipeline_mode = #tpu.pipeline_mode<synchronous>, transform_indices = @transform_6, window_bounds = array<i64: 128, 256>}, {pipeline_mode = #tpu.pipeline_mode<synchronous>, transform_indices = @transform_7, window_bounds = array<i64: 1, 256>}, {transform_indices = @transform_8, window_bounds = array<i64: 16, 256>}, {transform_indices = @transform_9, window_bounds = array<i64: 16, 128>}]} {
    %c0 = arith.constant 0 : index
    %c0_0 = arith.constant 0 : index
    %0 = vector.load %arg1[%c0, %c0_0] : memref<16x256xbf16, #tpu.memory_space<vmem>>, vector<16x256xbf16>
    %c0_1 = arith.constant 0 : index
    %c0_2 = arith.constant 0 : index
    %1 = vector.load %arg3[%c0_1, %c0_2] : memref<256x128xbf16, #tpu.memory_space<vmem>>, vector<256x128xbf16>
    %cst = arith.constant dense<0.000000e+00> : vector<16x128xf32>
    %2 = tpu.matmul %0, %1, %cst {dimension_numbers = #tpu.dot_dimension_numbers<[1], [0], [0], [1], [0, 0, 1, 1], [], []>} : vector<16x256xbf16>, vector<256x128xbf16>, vector<16x128xf32> -> vector<16x128xf32>
    %c0_3 = arith.constant 0 : index
    %c0_4 = arith.constant 0 : index
    %3 = vector.load %arg4[%c0_3, %c0_4] : memref<1x128xf32, #tpu.memory_space<vmem>>, vector<1x128xf32>
    %4 = vector.broadcast %3 : vector<1x128xf32> to vector<16x128xf32>
    %5 = arith.addf %2, %4 : vector<16x128xf32>
    %cst_5 = arith.constant 0.000000e+00 : f32
    %6 = vector.broadcast %cst_5 : f32 to vector<16x128xf32>
    %7 = arith.maximumf %5, %6 : vector<16x128xf32>
    %8 = arith.truncf %7 : vector<16x128xf32> to vector<16x128xbf16>
    %c0_6 = arith.constant 0 : index
    %c0_7 = arith.constant 0 : index
    %9 = vector.load %arg5[%c0_6, %c0_7] : memref<128x128xbf16, #tpu.memory_space<vmem>>, vector<128x128xbf16>
    %cst_8 = arith.constant dense<0.000000e+00> : vector<16x128xf32>
    %10 = tpu.matmul %8, %9, %cst_8 {dimension_numbers = #tpu.dot_dimension_numbers<[1], [0], [0], [1], [0, 0, 1, 1], [], []>} : vector<16x128xbf16>, vector<128x128xbf16>, vector<16x128xf32> -> vector<16x128xf32>
    %c0_9 = arith.constant 0 : index
    %c0_10 = arith.constant 0 : index
    %11 = vector.load %arg6[%c0_9, %c0_10] : memref<1x128xf32, #tpu.memory_space<vmem>>, vector<1x128xf32>
    %12 = vector.broadcast %11 : vector<1x128xf32> to vector<16x128xf32>
    %13 = arith.addf %10, %12 : vector<16x128xf32>
    %cst_11 = arith.constant 0.000000e+00 : f32
    %14 = vector.broadcast %cst_11 : f32 to vector<16x128xf32>
    %15 = arith.maximumf %13, %14 : vector<16x128xf32>
    %16 = arith.truncf %15 : vector<16x128xf32> to vector<16x128xbf16>
    %c0_12 = arith.constant 0 : index
    %c0_13 = arith.constant 0 : index
    %17 = vector.load %arg7[%c0_12, %c0_13] : memref<128x256xbf16, #tpu.memory_space<vmem>>, vector<128x256xbf16>
    %cst_14 = arith.constant dense<0.000000e+00> : vector<16x256xf32>
    %18 = tpu.matmul %16, %17, %cst_14 {dimension_numbers = #tpu.dot_dimension_numbers<[1], [0], [0], [1], [0, 0, 1, 1], [], []>} : vector<16x128xbf16>, vector<128x256xbf16>, vector<16x256xf32> -> vector<16x256xf32>
    %c0_15 = arith.constant 0 : index
    %c0_16 = arith.constant 0 : index
    %19 = vector.load %arg8[%c0_15, %c0_16] : memref<1x256xf32, #tpu.memory_space<vmem>>, vector<1x256xf32>
    %20 = vector.broadcast %19 : vector<1x256xf32> to vector<16x256xf32>
    %21 = arith.addf %18, %20 : vector<16x256xf32>
    %c0_17 = arith.constant 0 : index
    %c0_18 = arith.constant 0 : index
    %22 = vector.load %arg9[%c0_17, %c0_18] : memref<16x256xf32, #tpu.memory_space<vmem>>, vector<16x256xf32>
    tpu.vector_store %arg9[%c0_17, %c0_18], %21 {strides = array<i32>} : memref<16x256xf32, #tpu.memory_space<vmem>>, vector<16x256xf32>,
    %23 = vector.extract_strided_slice %21 {offsets = [0, 128], sizes = [16, 128], strides = [1, 1]} : vector<16x256xf32> to vector<16x128xf32>
    %24 = tpu.iota {dimensions = array<i32: 1>} : vector<1x128xi32>
    %c3_i32 = arith.constant 3 : i32
    %25 = vector.broadcast %c3_i32 : i32 to vector<1x128xi32>
    %26 = arith.andi %24, %25 : vector<1x128xi32>
    %c2_i32 = arith.constant 2 : i32
    %27 = vector.broadcast %c2_i32 : i32 to vector<1x128xi32>
    %28 = arith.cmpi slt, %26, %27 : vector<1x128xi32>
    %c1_i32 = arith.constant 1 : i32
    %29 = vector.broadcast %c1_i32 : i32 to vector<1x128xi32>
    %30 = arith.andi %26, %29 : vector<1x128xi32>
    %c0_i32 = arith.constant 0 : i32
    %31 = vector.broadcast %c0_i32 : i32 to vector<1x128xi32>
    %32 = arith.cmpi eq, %30, %31 : vector<1x128xi32>
    %c0_i32_19 = arith.constant 0 : i32
    %33 = vector.broadcast %c0_i32_19 : i32 to vector<1x128xi32>
    %34 = arith.cmpi eq, %26, %33 : vector<1x128xi32>
    %c1_i32_20 = arith.constant 1 : i32
    %35 = vector.broadcast %c1_i32_20 : i32 to vector<1x128xi32>
    %36 = arith.cmpi eq, %26, %35 : vector<1x128xi32>
    %c2_i32_21 = arith.constant 2 : i32
    %37 = vector.broadcast %c2_i32_21 : i32 to vector<1x128xi32>
    %38 = arith.cmpi eq, %26, %37 : vector<1x128xi32>
    %cst_22 = arith.constant 1.000000e-01 : f32
    %cst_23 = arith.constant 1.000000e-01 : f32
    %39 = vector.broadcast %cst_22 : f32 to vector<1x128xf32>
    %40 = vector.broadcast %cst_23 : f32 to vector<1x128xf32>
    %41 = arith.select %38, %39, %40 : vector<1x128xi1>, vector<1x128xf32>
    %cst_24 = arith.constant 5.000000e-02 : f32
    %42 = vector.broadcast %cst_24 : f32 to vector<1x128xf32>
    %43 = arith.select %36, %42, %41 : vector<1x128xi1>, vector<1x128xf32>
    %cst_25 = arith.constant 5.000000e-02 : f32
    %44 = vector.broadcast %cst_25 : f32 to vector<1x128xf32>
    %45 = arith.select %34, %44, %43 : vector<1x128xi1>, vector<1x128xf32>
    %46 = vector.broadcast %45 : vector<1x128xf32> to vector<16x128xf32>
    %47 = arith.mulf %23, %46 : vector<16x128xf32>
    %c0_26 = arith.constant 0 : index
    %c0_27 = arith.constant 0 : index
    %48 = vector.load %arg2[%c0_26, %c0_27] : memref<16x4xf32, #tpu.memory_space<vmem>>, vector<16x4xf32>
    %49 = vector.extract_strided_slice %48 {offsets = [0, 0], sizes = [16, 1], strides = [1, 1]} : vector<16x4xf32> to vector<16x1xf32>
    %50 = vector.extract_strided_slice %48 {offsets = [0, 1], sizes = [16, 1], strides = [1, 1]} : vector<16x4xf32> to vector<16x1xf32>
    %51 = vector.extract_strided_slice %48 {offsets = [0, 2], sizes = [16, 1], strides = [1, 1]} : vector<16x4xf32> to vector<16x1xf32>
    %52 = vector.extract_strided_slice %48 {offsets = [0, 3], sizes = [16, 1], strides = [1, 1]} : vector<16x4xf32> to vector<16x1xf32>
    %53 = arith.subf %51, %49 : vector<16x1xf32>
    %cst_28 = arith.constant 1.000000e+00 : f32
    %54 = vector.broadcast %cst_28 : f32 to vector<16x1xf32>
    %55 = arith.addf %53, %54 : vector<16x1xf32>
    %56 = arith.subf %52, %50 : vector<16x1xf32>
    %cst_29 = arith.constant 1.000000e+00 : f32
    %57 = vector.broadcast %cst_29 : f32 to vector<16x1xf32>
    %58 = arith.addf %56, %57 : vector<16x1xf32>
    %cst_30 = arith.constant 5.000000e-01 : f32
    %59 = vector.broadcast %cst_30 : f32 to vector<16x1xf32>
    %60 = arith.mulf %59, %55 : vector<16x1xf32>
    %61 = arith.addf %49, %60 : vector<16x1xf32>
    %cst_31 = arith.constant 5.000000e-01 : f32
    %62 = vector.broadcast %cst_31 : f32 to vector<16x1xf32>
    %63 = arith.mulf %62, %58 : vector<16x1xf32>
    %64 = arith.addf %50, %63 : vector<16x1xf32>
    %65 = vector.shape_cast %32 : vector<1x128xi1> to vector<1x128xi1>
    %66 = vector.broadcast %65 : vector<1x128xi1> to vector<16x128xi1>
    %67 = vector.shape_cast %55 : vector<16x1xf32> to vector<16x1xf32>
    %68 = vector.broadcast %67 : vector<16x1xf32> to vector<16x128xf32>
    %69 = vector.shape_cast %58 : vector<16x1xf32> to vector<16x1xf32>
    %70 = vector.broadcast %69 : vector<16x1xf32> to vector<16x128xf32>
    %71 = arith.select %66, %68, %70 : vector<16x128xi1>, vector<16x128xf32>
    %72 = vector.shape_cast %32 : vector<1x128xi1> to vector<1x128xi1>
    %73 = vector.broadcast %72 : vector<1x128xi1> to vector<16x128xi1>
    %74 = vector.shape_cast %61 : vector<16x1xf32> to vector<16x1xf32>
    %75 = vector.broadcast %74 : vector<16x1xf32> to vector<16x128xf32>
    %76 = vector.shape_cast %64 : vector<16x1xf32> to vector<16x1xf32>
    %77 = vector.broadcast %76 : vector<16x1xf32> to vector<16x128xf32>
    %78 = arith.select %73, %75, %77 : vector<16x128xi1>, vector<16x128xf32>
    %cst_32 = arith.constant 6.300000e+01 : f32
    %cst_33 = arith.constant 6.300000e+01 : f32
    %79 = vector.broadcast %cst_32 : f32 to vector<1x128xf32>
    %80 = vector.broadcast %cst_33 : f32 to vector<1x128xf32>
    %81 = arith.select %32, %79, %80 : vector<1x128xi1>, vector<1x128xf32>
    %c2_i32_34 = arith.constant 2 : i32
    %82 = tpu.dynamic_rotate %47 by %c2_i32_34 dim 1 : vector<16x128xf32>, i32 -> vector<16x128xf32>
    %83 = vector.shape_cast %28 : vector<1x128xi1> to vector<1x128xi1>
    %84 = vector.broadcast %83 : vector<1x128xi1> to vector<16x128xi1>
    %85 = arith.select %84, %47, %82 : vector<16x128xi1>, vector<16x128xf32>
    %c126_i32 = arith.constant 126 : i32
    %86 = tpu.dynamic_rotate %47 by %c126_i32 dim 1 : vector<16x128xf32>, i32 -> vector<16x128xf32>
    %87 = vector.shape_cast %28 : vector<1x128xi1> to vector<1x128xi1>
    %88 = vector.broadcast %87 : vector<1x128xi1> to vector<16x128xi1>
    %89 = arith.select %88, %86, %47 : vector<16x128xi1>, vector<16x128xf32>
    %cst_35 = arith.constant 4.13516665 : f32
    %90 = vector.broadcast %cst_35 : f32 to vector<16x128xf32>
    %91 = arith.minimumf %89, %90 : vector<16x128xf32>
    %92 = arith.mulf %85, %71 : vector<16x128xf32>
    %93 = arith.addf %92, %78 : vector<16x128xf32>
    %94 = math.exp %91 : vector<16x128xf32>
    %cst_36 = arith.constant 5.000000e-01 : f32
    %95 = vector.broadcast %cst_36 : f32 to vector<16x128xf32>
    %96 = arith.mulf %95, %94 : vector<16x128xf32>
    %97 = arith.mulf %96, %71 : vector<16x128xf32>
    %98 = arith.subf %93, %97 : vector<16x128xf32>
    %99 = arith.addf %93, %97 : vector<16x128xf32>
    %cst_37 = arith.constant 1.000000e+00 : f32
    %100 = vector.broadcast %cst_37 : f32 to vector<16x128xf32>
    %101 = arith.subf %99, %100 : vector<16x128xf32>
    %102 = vector.shape_cast %28 : vector<1x128xi1> to vector<1x128xi1>
    %103 = vector.broadcast %102 : vector<1x128xi1> to vector<16x128xi1>
    %104 = arith.select %103, %98, %101 : vector<16x128xi1>, vector<16x128xf32>
    %cst_38 = arith.constant 0.000000e+00 : f32
    %105 = vector.broadcast %cst_38 : f32 to vector<16x128xf32>
    %106 = arith.maximumf %105, %104 : vector<16x128xf32>
    %107 = vector.broadcast %81 : vector<1x128xf32> to vector<16x128xf32>
    %108 = arith.minimumf %107, %106 : vector<16x128xf32>
    %c0_39 = arith.constant 0 : index
    %c0_40 = arith.constant 0 : index
    %109 = vector.load %arg10[%c0_39, %c0_40] : memref<16x128xf32, #tpu.memory_space<vmem>>, vector<16x128xf32>
    tpu.vector_store %arg10[%c0_39, %c0_40], %108 {strides = array<i32>} : memref<16x128xf32, #tpu.memory_space<vmem>>, vector<16x128xf32>,
    return
  }
  func.func @transform_0(%arg0: i32) -> (i32, i32) {
    %c0_i32 = arith.constant 0 : i32
    %c0_i32_0 = arith.constant 0 : i32
    return %arg0, %c0_i32 : i32, i32
  }
  func.func @transform_1(%arg0: i32) -> (i32, i32) {
    %c0_i32 = arith.constant 0 : i32
    %c0_i32_0 = arith.constant 0 : i32
    return %arg0, %c0_i32 : i32, i32
  }
  func.func @transform_2(%arg0: i32) -> (i32, i32) {
    %c0_i32 = arith.constant 0 : i32
    %c0_i32_0 = arith.constant 0 : i32
    %c0_i32_1 = arith.constant 0 : i32
    return %c0_i32, %c0_i32_0 : i32, i32
  }
  func.func @transform_3(%arg0: i32) -> (i32, i32) {
    %c0_i32 = arith.constant 0 : i32
    %c0_i32_0 = arith.constant 0 : i32
    %c0_i32_1 = arith.constant 0 : i32
    return %c0_i32, %c0_i32_0 : i32, i32
  }
  func.func @transform_4(%arg0: i32) -> (i32, i32) {
    %c0_i32 = arith.constant 0 : i32
    %c0_i32_0 = arith.constant 0 : i32
    %c0_i32_1 = arith.constant 0 : i32
    return %c0_i32, %c0_i32_0 : i32, i32
  }
  func.func @transform_5(%arg0: i32) -> (i32, i32) {
    %c0_i32 = arith.constant 0 : i32
    %c0_i32_0 = arith.constant 0 : i32
    %c0_i32_1 = arith.constant 0 : i32
    return %c0_i32, %c0_i32_0 : i32, i32
  }
  func.func @transform_6(%arg0: i32) -> (i32, i32) {
    %c0_i32 = arith.constant 0 : i32
    %c0_i32_0 = arith.constant 0 : i32
    %c0_i32_1 = arith.constant 0 : i32
    return %c0_i32, %c0_i32_0 : i32, i32
  }
  func.func @transform_7(%arg0: i32) -> (i32, i32) {
    %c0_i32 = arith.constant 0 : i32
    %c0_i32_0 = arith.constant 0 : i32
    %c0_i32_1 = arith.constant 0 : i32
    return %c0_i32, %c0_i32_0 : i32, i32
  }
  func.func @transform_8(%arg0: i32) -> (i32, i32) {
    %c0_i32 = arith.constant 0 : i32
    %c0_i32_0 = arith.constant 0 : i32
    return %arg0, %c0_i32 : i32, i32
  }
  func.func @transform_9(%arg0: i32) -> (i32, i32) {
    %c0_i32 = arith.constant 0 : i32
    %c0_i32_0 = arith.constant 0 : i32
    return %arg0, %c0_i32 : i32, i32
  }
}

module attributes {stable_mosaic.version = 11 : i64} {
  func.func @kernel(%arg0: i32, %arg1: memref<16x256xbf16, #tpu.memory_space<vmem>>, %arg2: memref<16x4xf32, #tpu.memory_space<vmem>>, %arg3: memref<256x128xbf16, #tpu.memory_space<vmem>>, %arg4: memref<1x128xf32, #tpu.memory_space<vmem>>, %arg5: memref<128x128xbf16, #tpu.memory_space<vmem>>, %arg6: memref<1x128xf32, #tpu.memory_space<vmem>>, %arg7: memref<128x256xbf16, #tpu.memory_space<vmem>>, %arg8: memref<1x256xf32, #tpu.memory_space<vmem>>, %arg9: memref<16x256xf32, #tpu.memory_space<vmem>>, %arg10: memref<16x128xf32, #tpu.memory_space<vmem>>) attributes {dimension_semantics = [#tpu.dimension_semantics<parallel>], iteration_bounds = array<i64: 1>, scalar_prefetch = 0 : i64, scratch_operands = 0 : i64, tpu.core_type = #tpu.core_type<tc>, window_params = [{transform_indices = @transform_0, window_bounds = array<i64: 16, 256>}, {transform_indices = @transform_1, window_bounds = array<i64: 16, 4>}, {pipeline_mode = #tpu.pipeline_mode<synchronous>, transform_indices = @transform_2, window_bounds = array<i64: 256, 128>}, {pipeline_mode = #tpu.pipeline_mode<synchronous>, transform_indices = @transform_3, window_bounds = array<i64: 1, 128>}, {pipeline_mode = #tpu.pipeline_mode<synchronous>, transform_indices = @transform_4, window_bounds = array<i64: 128, 128>}, {pipeline_mode = #tpu.pipeline_mode<synchronous>, transform_indices = @transform_5, window_bounds = array<i64: 1, 128>}, {pipeline_mode = #tpu.pipeline_mode<synchronous>, transform_indices = @transform_6, window_bounds = array<i64: 128, 256>}, {pipeline_mode = #tpu.pipeline_mode<synchronous>, transform_indices = @transform_7, window_bounds = array<i64: 1, 256>}, {transform_indices = @transform_8, window_bounds = array<i64: 16, 256>}, {transform_indices = @transform_9, window_bounds = array<i64: 16, 128>}]} {
    %c0 = arith.constant 0 : index
    %c0_0 = arith.constant 0 : index
    %0 = vector.load %arg1[%c0, %c0_0] : memref<16x256xbf16, #tpu.memory_space<vmem>>, vector<16x256xbf16>
    %c0_1 = arith.constant 0 : index
    %c0_2 = arith.constant 0 : index
    %1 = vector.load %arg3[%c0_1, %c0_2] : memref<256x128xbf16, #tpu.memory_space<vmem>>, vector<256x128xbf16>
    %cst = arith.constant dense<0.000000e+00> : vector<16x128xf32>
    %2 = tpu.matmul %0, %1, %cst {dimension_numbers = #tpu.dot_dimension_numbers<[1], [0], [0], [1], [0, 0, 1, 1], [], []>} : vector<16x256xbf16>, vector<256x128xbf16>, vector<16x128xf32> -> vector<16x128xf32>
    %c0_3 = arith.constant 0 : index
    %c0_4 = arith.constant 0 : index
    %3 = vector.load %arg4[%c0_3, %c0_4] : memref<1x128xf32, #tpu.memory_space<vmem>>, vector<1x128xf32>
    %4 = vector.broadcast %3 : vector<1x128xf32> to vector<16x128xf32>
    %5 = arith.addf %2, %4 : vector<16x128xf32>
    %cst_5 = arith.constant 0.000000e+00 : f32
    %6 = vector.broadcast %cst_5 : f32 to vector<16x128xf32>
    %7 = arith.maximumf %5, %6 : vector<16x128xf32>
    %8 = arith.truncf %7 : vector<16x128xf32> to vector<16x128xbf16>
    %c0_6 = arith.constant 0 : index
    %c0_7 = arith.constant 0 : index
    %9 = vector.load %arg5[%c0_6, %c0_7] : memref<128x128xbf16, #tpu.memory_space<vmem>>, vector<128x128xbf16>
    %cst_8 = arith.constant dense<0.000000e+00> : vector<16x128xf32>
    %10 = tpu.matmul %8, %9, %cst_8 {dimension_numbers = #tpu.dot_dimension_numbers<[1], [0], [0], [1], [0, 0, 1, 1], [], []>} : vector<16x128xbf16>, vector<128x128xbf16>, vector<16x128xf32> -> vector<16x128xf32>
    %c0_9 = arith.constant 0 : index
    %c0_10 = arith.constant 0 : index
    %11 = vector.load %arg6[%c0_9, %c0_10] : memref<1x128xf32, #tpu.memory_space<vmem>>, vector<1x128xf32>
    %12 = vector.broadcast %11 : vector<1x128xf32> to vector<16x128xf32>
    %13 = arith.addf %10, %12 : vector<16x128xf32>
    %cst_11 = arith.constant 0.000000e+00 : f32
    %14 = vector.broadcast %cst_11 : f32 to vector<16x128xf32>
    %15 = arith.maximumf %13, %14 : vector<16x128xf32>
    %16 = arith.truncf %15 : vector<16x128xf32> to vector<16x128xbf16>
    %c0_12 = arith.constant 0 : index
    %c0_13 = arith.constant 0 : index
    %17 = vector.load %arg7[%c0_12, %c0_13] : memref<128x256xbf16, #tpu.memory_space<vmem>>, vector<128x256xbf16>
    %cst_14 = arith.constant dense<0.000000e+00> : vector<16x256xf32>
    %18 = tpu.matmul %16, %17, %cst_14 {dimension_numbers = #tpu.dot_dimension_numbers<[1], [0], [0], [1], [0, 0, 1, 1], [], []>} : vector<16x128xbf16>, vector<128x256xbf16>, vector<16x256xf32> -> vector<16x256xf32>
    %c0_15 = arith.constant 0 : index
    %c0_16 = arith.constant 0 : index
    %19 = vector.load %arg8[%c0_15, %c0_16] : memref<1x256xf32, #tpu.memory_space<vmem>>, vector<1x256xf32>
    %20 = vector.broadcast %19 : vector<1x256xf32> to vector<16x256xf32>
    %21 = arith.addf %18, %20 : vector<16x256xf32>
    %c0_17 = arith.constant 0 : index
    %c0_18 = arith.constant 0 : index
    %22 = vector.load %arg9[%c0_17, %c0_18] : memref<16x256xf32, #tpu.memory_space<vmem>>, vector<16x256xf32>
    tpu.vector_store %arg9[%c0_17, %c0_18], %21 {strides = array<i32>} : memref<16x256xf32, #tpu.memory_space<vmem>>, vector<16x256xf32>,
    %23 = vector.extract_strided_slice %21 {offsets = [0, 128], sizes = [16, 128], strides = [1, 1]} : vector<16x256xf32> to vector<16x128xf32>
    %24 = tpu.iota {dimensions = array<i32: 1>} : vector<1x128xi32>
    %c3_i32 = arith.constant 3 : i32
    %25 = vector.broadcast %c3_i32 : i32 to vector<1x128xi32>
    %26 = arith.andi %24, %25 : vector<1x128xi32>
    %c2_i32 = arith.constant 2 : i32
    %27 = vector.broadcast %c2_i32 : i32 to vector<1x128xi32>
    %28 = arith.cmpi slt, %26, %27 : vector<1x128xi32>
    %c1_i32 = arith.constant 1 : i32
    %29 = vector.broadcast %c1_i32 : i32 to vector<1x128xi32>
    %30 = arith.andi %26, %29 : vector<1x128xi32>
    %c0_i32 = arith.constant 0 : i32
    %31 = vector.broadcast %c0_i32 : i32 to vector<1x128xi32>
    %32 = arith.cmpi eq, %30, %31 : vector<1x128xi32>
    %c0_i32_19 = arith.constant 0 : i32
    %33 = vector.broadcast %c0_i32_19 : i32 to vector<1x128xi32>
    %34 = arith.cmpi eq, %26, %33 : vector<1x128xi32>
    %c1_i32_20 = arith.constant 1 : i32
    %35 = vector.broadcast %c1_i32_20 : i32 to vector<1x128xi32>
    %36 = arith.cmpi eq, %26, %35 : vector<1x128xi32>
    %c2_i32_21 = arith.constant 2 : i32
    %37 = vector.broadcast %c2_i32_21 : i32 to vector<1x128xi32>
    %38 = arith.cmpi eq, %26, %37 : vector<1x128xi32>
    %cst_22 = arith.constant 0.0666666701 : f32
    %cst_23 = arith.constant 0.0666666701 : f32
    %39 = vector.broadcast %cst_22 : f32 to vector<1x128xf32>
    %40 = vector.broadcast %cst_23 : f32 to vector<1x128xf32>
    %41 = arith.select %38, %39, %40 : vector<1x128xi1>, vector<1x128xf32>
    %cst_24 = arith.constant 0.0333333351 : f32
    %42 = vector.broadcast %cst_24 : f32 to vector<1x128xf32>
    %43 = arith.select %36, %42, %41 : vector<1x128xi1>, vector<1x128xf32>
    %cst_25 = arith.constant 0.0333333351 : f32
    %44 = vector.broadcast %cst_25 : f32 to vector<1x128xf32>
    %45 = arith.select %34, %44, %43 : vector<1x128xi1>, vector<1x128xf32>
    %46 = vector.broadcast %45 : vector<1x128xf32> to vector<16x128xf32>
    %47 = arith.mulf %23, %46 : vector<16x128xf32>
    %c0_26 = arith.constant 0 : index
    %c0_27 = arith.constant 0 : index
    %48 = vector.load %arg2[%c0_26, %c0_27] : memref<16x4xf32, #tpu.memory_space<vmem>>, vector<16x4xf32>
    %49 = vector.extract_strided_slice %48 {offsets = [0, 0], sizes = [16, 1], strides = [1, 1]} : vector<16x4xf32> to vector<16x1xf32>
    %50 = vector.extract_strided_slice %48 {offsets = [0, 1], sizes = [16, 1], strides = [1, 1]} : vector<16x4xf32> to vector<16x1xf32>
    %51 = vector.extract_strided_slice %48 {offsets = [0, 2], sizes = [16, 1], strides = [1, 1]} : vector<16x4xf32> to vector<16x1xf32>
    %52 = vector.extract_strided_slice %48 {offsets = [0, 3], sizes = [16, 1], strides = [1, 1]} : vector<16x4xf32> to vector<16x1xf32>
    %53 = arith.subf %51, %49 : vector<16x1xf32>
    %cst_28 = arith.constant 1.000000e+00 : f32
    %54 = vector.broadcast %cst_28 : f32 to vector<16x1xf32>
    %55 = arith.addf %53, %54 : vector<16x1xf32>
    %56 = arith.subf %52, %50 : vector<16x1xf32>
    %cst_29 = arith.constant 1.000000e+00 : f32
    %57 = vector.broadcast %cst_29 : f32 to vector<16x1xf32>
    %58 = arith.addf %56, %57 : vector<16x1xf32>
    %cst_30 = arith.constant 5.000000e-01 : f32
    %59 = vector.broadcast %cst_30 : f32 to vector<16x1xf32>
    %60 = arith.mulf %59, %55 : vector<16x1xf32>
    %61 = arith.addf %49, %60 : vector<16x1xf32>
    %cst_31 = arith.constant 5.000000e-01 : f32
    %62 = vector.broadcast %cst_31 : f32 to vector<16x1xf32>
    %63 = arith.mulf %62, %58 : vector<16x1xf32>
    %64 = arith.addf %50, %63 : vector<16x1xf32>
    %65 = vector.shape_cast %32 : vector<1x128xi1> to vector<1x128xi1>
    %66 = vector.broadcast %65 : vector<1x128xi1> to vector<16x128xi1>
    %67 = vector.shape_cast %55 : vector<16x1xf32> to vector<16x1xf32>
    %68 = vector.broadcast %67 : vector<16x1xf32> to vector<16x128xf32>
    %69 = vector.shape_cast %58 : vector<16x1xf32> to vector<16x1xf32>
    %70 = vector.broadcast %69 : vector<16x1xf32> to vector<16x128xf32>
    %71 = arith.select %66, %68, %70 : vector<16x128xi1>, vector<16x128xf32>
    %72 = vector.shape_cast %32 : vector<1x128xi1> to vector<1x128xi1>
    %73 = vector.broadcast %72 : vector<1x128xi1> to vector<16x128xi1>
    %74 = vector.shape_cast %61 : vector<16x1xf32> to vector<16x1xf32>
    %75 = vector.broadcast %74 : vector<16x1xf32> to vector<16x128xf32>
    %76 = vector.shape_cast %64 : vector<16x1xf32> to vector<16x1xf32>
    %77 = vector.broadcast %76 : vector<16x1xf32> to vector<16x128xf32>
    %78 = arith.select %73, %75, %77 : vector<16x128xi1>, vector<16x128xf32>
    %cst_32 = arith.constant 6.300000e+01 : f32
    %cst_33 = arith.constant 6.300000e+01 : f32
    %79 = vector.broadcast %cst_32 : f32 to vector<1x128xf32>
    %80 = vector.broadcast %cst_33 : f32 to vector<1x128xf32>
    %81 = arith.select %32, %79, %80 : vector<1x128xi1>, vector<1x128xf32>
    %c2_i32_34 = arith.constant 2 : i32
    %82 = tpu.dynamic_rotate %47 by %c2_i32_34 dim 1 : vector<16x128xf32>, i32 -> vector<16x128xf32>
    %83 = vector.shape_cast %28 : vector<1x128xi1> to vector<1x128xi1>
    %84 = vector.broadcast %83 : vector<1x128xi1> to vector<16x128xi1>
    %85 = arith.select %84, %47, %82 : vector<16x128xi1>, vector<16x128xf32>
    %c126_i32 = arith.constant 126 : i32
    %86 = tpu.dynamic_rotate %47 by %c126_i32 dim 1 : vector<16x128xf32>, i32 -> vector<16x128xf32>
    %87 = vector.shape_cast %28 : vector<1x128xi1> to vector<1x128xi1>
    %88 = vector.broadcast %87 : vector<1x128xi1> to vector<16x128xi1>
    %89 = arith.select %88, %86, %47 : vector<16x128xi1>, vector<16x128xf32>
    %cst_35 = arith.constant 4.13516665 : f32
    %90 = vector.broadcast %cst_35 : f32 to vector<16x128xf32>
    %91 = arith.minimumf %89, %90 : vector<16x128xf32>
    %92 = arith.mulf %85, %71 : vector<16x128xf32>
    %93 = arith.addf %92, %78 : vector<16x128xf32>
    %94 = math.exp %91 : vector<16x128xf32>
    %cst_36 = arith.constant 5.000000e-01 : f32
    %95 = vector.broadcast %cst_36 : f32 to vector<16x128xf32>
    %96 = arith.mulf %95, %94 : vector<16x128xf32>
    %97 = arith.mulf %96, %71 : vector<16x128xf32>
    %98 = arith.subf %93, %97 : vector<16x128xf32>
    %99 = arith.addf %93, %97 : vector<16x128xf32>
    %cst_37 = arith.constant 1.000000e+00 : f32
    %100 = vector.broadcast %cst_37 : f32 to vector<16x128xf32>
    %101 = arith.subf %99, %100 : vector<16x128xf32>
    %102 = vector.shape_cast %28 : vector<1x128xi1> to vector<1x128xi1>
    %103 = vector.broadcast %102 : vector<1x128xi1> to vector<16x128xi1>
    %104 = arith.select %103, %98, %101 : vector<16x128xi1>, vector<16x128xf32>
    %cst_38 = arith.constant 0.000000e+00 : f32
    %105 = vector.broadcast %cst_38 : f32 to vector<16x128xf32>
    %106 = arith.maximumf %105, %104 : vector<16x128xf32>
    %107 = vector.broadcast %81 : vector<1x128xf32> to vector<16x128xf32>
    %108 = arith.minimumf %107, %106 : vector<16x128xf32>
    %c0_39 = arith.constant 0 : index
    %c0_40 = arith.constant 0 : index
    %109 = vector.load %arg10[%c0_39, %c0_40] : memref<16x128xf32, #tpu.memory_space<vmem>>, vector<16x128xf32>
    tpu.vector_store %arg10[%c0_39, %c0_40], %108 {strides = array<i32>} : memref<16x128xf32, #tpu.memory_space<vmem>>, vector<16x128xf32>,
    return
  }
  func.func @transform_0(%arg0: i32) -> (i32, i32) {
    %c0_i32 = arith.constant 0 : i32
    %c0_i32_0 = arith.constant 0 : i32
    return %arg0, %c0_i32 : i32, i32
  }
  func.func @transform_1(%arg0: i32) -> (i32, i32) {
    %c0_i32 = arith.constant 0 : i32
    %c0_i32_0 = arith.constant 0 : i32
    return %arg0, %c0_i32 : i32, i32
  }
  func.func @transform_2(%arg0: i32) -> (i32, i32) {
    %c0_i32 = arith.constant 0 : i32
    %c0_i32_0 = arith.constant 0 : i32
    %c0_i32_1 = arith.constant 0 : i32
    return %c0_i32, %c0_i32_0 : i32, i32
  }
  func.func @transform_3(%arg0: i32) -> (i32, i32) {
    %c0_i32 = arith.constant 0 : i32
    %c0_i32_0 = arith.constant 0 : i32
    %c0_i32_1 = arith.constant 0 : i32
    return %c0_i32, %c0_i32_0 : i32, i32
  }
  func.func @transform_4(%arg0: i32) -> (i32, i32) {
    %c0_i32 = arith.constant 0 : i32
    %c0_i32_0 = arith.constant 0 : i32
    %c0_i32_1 = arith.constant 0 : i32
    return %c0_i32, %c0_i32_0 : i32, i32
  }
  func.func @transform_5(%arg0: i32) -> (i32, i32) {
    %c0_i32 = arith.constant 0 : i32
    %c0_i32_0 = arith.constant 0 : i32
    %c0_i32_1 = arith.constant 0 : i32
    return %c0_i32, %c0_i32_0 : i32, i32
  }
  func.func @transform_6(%arg0: i32) -> (i32, i32) {
    %c0_i32 = arith.constant 0 : i32
    %c0_i32_0 = arith.constant 0 : i32
    %c0_i32_1 = arith.constant 0 : i32
    return %c0_i32, %c0_i32_0 : i32, i32
  }
  func.func @transform_7(%arg0: i32) -> (i32, i32) {
    %c0_i32 = arith.constant 0 : i32
    %c0_i32_0 = arith.constant 0 : i32
    %c0_i32_1 = arith.constant 0 : i32
    return %c0_i32, %c0_i32_0 : i32, i32
  }
  func.func @transform_8(%arg0: i32) -> (i32, i32) {
    %c0_i32 = arith.constant 0 : i32
    %c0_i32_0 = arith.constant 0 : i32
    return %arg0, %c0_i32 : i32, i32
  }
  func.func @transform_9(%arg0: i32) -> (i32, i32) {
    %c0_i32 = arith.constant 0 : i32
    %c0_i32_0 = arith.constant 0 : i32
    return %arg0, %c0_i32 : i32, i32
  }
}

</mosaic_0001>

<llo_original>
// kernel: roi_box_cascade_head_forward.3
$region0: #{roi_box_cascade_head_forward.3}
  #allocation0 [shape = 'u32[]', space=smem, size = 0x4, offset = 0x4, fixed_abs, tag = 'smem constant byte address 0x4 - core index']
  #allocation1 [shape = 'u32[144,128]{1,0:T(1,128)}', space=vmem, size = 0x12000, scoped, tag = 'internal scratch']
  %s0 = inlined_call_operand.vmem [shape: bf16[16,256], index: 0, kind: input, shape index: {}]
  %s1 = inlined_call_operand.vmem [shape: f32[16,4], index: 1, kind: input, shape index: {}]
  %s2 = inlined_call_operand.vmem [shape: bf16[256,128], index: 2, kind: input, shape index: {}]
  %s3 = inlined_call_operand.vmem [shape: f32[1,128], index: 3, kind: input, shape index: {}]
  %s4 = inlined_call_operand.vmem [shape: bf16[128,128], index: 4, kind: input, shape index: {}]
  %s5 = inlined_call_operand.vmem [shape: f32[1,128], index: 5, kind: input, shape index: {}]
  %s6 = inlined_call_operand.vmem [shape: bf16[128,256], index: 6, kind: input, shape index: {}]
  %s7 = inlined_call_operand.vmem [shape: f32[1,256], index: 7, kind: input, shape index: {}]
  %s8 = inlined_call_operand.vmem [shape: bf16[16,128], index: 8, kind: output, shape index: {0}]
  %s9 = inlined_call_operand.hbm [shape: f32[16,256], index: 9, kind: output, shape index: {1}]
  %s10 = inlined_call_operand.vmem [shape: f32[16,128], index: 10, kind: output, shape index: {2}]
  %11 = xla_tuple %s8, %s9, %s10
  %s12 = sld [smem:[#allocation0]]
  $region58: #{roi_box_cascade_head_forward.3} parent=0
    _
  %s14 = ssub.s32 1, %s12
  %s15 = scalar_select 0, %s14, %s12
  $region1: #{roi_box_cascade_head_forward.3} parent=0
    #allocation2 [shape = 'u8[16384]{0}', space=vmem, size = 0x4000, scoped, tag = 'output window, operand 1, single buffered']
    #allocation3 [shape = 's32[1]{0}', space=sflag, size = 0x4, scoped, tag = 'scoped memory for roi_box_cascade_head_forward.3']
    %16 = vsyncpa [#allocation3], 0
    // Predicated region
    $region2: #{roi_box_cascade_head_forward.3} parent=1 // pred_check
      _
    $region3: #{roi_box_cascade_head_forward.3} parent=1 // pred_check_branch
      %18 = sbr.rel (0) target = $region5
    $region4: #{roi_box_cascade_head_forward.3} parent=1 // pred_region
      _
    $region5: #{roi_box_cascade_head_forward.3} parent=1 // pred_fallthru
      _
    // Predicated region
    $region6: #{roi_box_cascade_head_forward.3} parent=1 // pred_check
      _
    $region7: #{roi_box_cascade_head_forward.3} parent=1 // pred_check_branch
      %20 = sbr.rel (0) target = $region9
    $region8: #{roi_box_cascade_head_forward.3} parent=1 // pred_region
      _
    $region9: #{roi_box_cascade_head_forward.3} parent=1 // pred_fallthru
      _
    // Predicated region
    $region10: #{roi_box_cascade_head_forward.3} parent=1 // pred_check
      _
    $region11: #{roi_box_cascade_head_forward.3} parent=1 // pred_check_branch
      %22 = sbr.rel (0) target = $region13
    $region12: #{roi_box_cascade_head_forward.3} parent=1 // pred_region
      _
    $region13: #{roi_box_cascade_head_forward.3} parent=1 // pred_fallthru
      _
    // Predicated region
    $region14: #{roi_box_cascade_head_forward.3} parent=1 // pred_check
      _
    $region15: #{roi_box_cascade_head_forward.3} parent=1 // pred_check_branch
      %24 = sbr.rel (0) target = $region17
    $region16: #{roi_box_cascade_head_forward.3} parent=1 // pred_region
      _
    $region17: #{roi_box_cascade_head_forward.3} parent=1 // pred_fallthru
      _
    // Predicated region
    $region18: #{roi_box_cascade_head_forward.3} parent=1 // pred_check
      _
    $region19: #{roi_box_cascade_head_forward.3} parent=1 // pred_check_branch
      %26 = sbr.rel (0) target = $region21
    $region20: #{roi_box_cascade_head_forward.3} parent=1 // pred_region
      _
    $region21: #{roi_box_cascade_head_forward.3} parent=1 // pred_fallthru
      _
    // Predicated region
    $region22: #{roi_box_cascade_head_forward.3} parent=1 // pred_check
      _
    $region23: #{roi_box_cascade_head_forward.3} parent=1 // pred_check_branch
      %28 = sbr.rel (0) target = $region25
    $region24: #{roi_box_cascade_head_forward.3} parent=1 // pred_region
      _
    $region25: #{roi_box_cascade_head_forward.3} parent=1 // pred_fallthru
      _
    // Predicated region
    $region26: #{roi_box_cascade_head_forward.3} parent=1 // pred_check
      _
    $region27: #{roi_box_cascade_head_forward.3} parent=1 // pred_check_branch
      %30 = sbr.rel (0) target = $region29
    $region28: #{roi_box_cascade_head_forward.3} parent=1 // pred_region
      _
    $region29: #{roi_box_cascade_head_forward.3} parent=1 // pred_fallthru
      _
    // Predicated region
    $region30: #{roi_box_cascade_head_forward.3} parent=1 // pred_check
      _
    $region31: #{roi_box_cascade_head_forward.3} parent=1 // pred_check_branch
      %32 = sbr.rel (0) target = $region33
    $region32: #{roi_box_cascade_head_forward.3} parent=1 // pred_region
      _
    $region33: #{roi_box_cascade_head_forward.3} parent=1 // pred_fallthru
      _
    %v34 = vld [vmem:[%s0] sm:$0xff]
    %v35 = vld [vmem:[%s0 + $0x8] sm:$0xff]
    %v36 = vld [vmem:[%s2] sm:$0xf]
    %v37 = vld [vmem:[%s2 + $0x4] sm:$0xf]
    %v38 = vld [vmem:[%s2 + $0x8] sm:$0xf]
    %v39 = vld [vmem:[%s2 + $0xc] sm:$0xf]
    %v40 = vld [vmem:[%s2 + $0x10] sm:$0xf]
    %v41 = vld [vmem:[%s2 + $0x14] sm:$0xf]
    %v42 = vld [vmem:[%s2 + $0x18] sm:$0xf]
    %v43 = vld [vmem:[%s2 + $0x1c] sm:$0xf]
    %v44 = vld [vmem:[%s2 + $0x20] sm:$0xf]
    %v45 = vld [vmem:[%s2 + $0x24] sm:$0xf]
    %v46 = vld [vmem:[%s2 + $0x28] sm:$0xf]
    %v47 = vld [vmem:[%s2 + $0x2c] sm:$0xf]
    %v48 = vld [vmem:[%s2 + $0x30] sm:$0xf]
    %v49 = vld [vmem:[%s2 + $0x34] sm:$0xf]
    %v50 = vld [vmem:[%s2 + $0x38] sm:$0xf]
    %v51 = vld [vmem:[%s2 + $0x3c] sm:$0xf]
    %v52 = vld [vmem:[%s2 + $0x40] sm:$0xf]
    %v53 = vld [vmem:[%s2 + $0x44] sm:$0xf]
    %v54 = vld [vmem:[%s2 + $0x48] sm:$0xf]
    %v55 = vld [vmem:[%s2 + $0x4c] sm:$0xf]
    %v56 = vld [vmem:[%s2 + $0x50] sm:$0xf]
    %v57 = vld [vmem:[%s2 + $0x54] sm:$0xf]
    %v58 = vld [vmem:[%s2 + $0x58] sm:$0xf]
    %v59 = vld [vmem:[%s2 + $0x5c] sm:$0xf]
    %v60 = vld [vmem:[%s2 + $0x60] sm:$0xf]
    %v61 = vld [vmem:[%s2 + $0x64] sm:$0xf]
    %v62 = vld [vmem:[%s2 + $0x68] sm:$0xf]
    %v63 = vld [vmem:[%s2 + $0x6c] sm:$0xf]
    %v64 = vld [vmem:[%s2 + $0x70] sm:$0xf]
    %v65 = vld [vmem:[%s2 + $0x74] sm:$0xf]
    %v66 = vld [vmem:[%s2 + $0x78] sm:$0xf]
    %v67 = vld [vmem:[%s2 + $0x7c] sm:$0xf]
    %v68 = vld [vmem:[%s3] sm:$0x1]
    %v70 = vlaneseq
    %v71 = vshrl.u32 %v70, 7
    %v72 = vsub.s32 0, %v71
    %v73 = vrot.slane %v68, %v72
    %v77 = vunpack.c.l.b16 %v34
    %v78 = vunpack.c.h.b16 %v34
    %v79 = vunpack.c.l.b16 %v35
    %v80 = vunpack.c.h.b16 %v35
    %v81 = vpack.c.b16 %v79, %v77
    %v82 = vpack.c.b16 %v80, %v78
    %v117 = vunpack.c.l.b16 %v36
    %v118 = vunpack.c.l.b16 %v37
    %v119 = vunpack.c.l.b16 %v38
    %v120 = vunpack.c.l.b16 %v39
    %v121 = vunpack.c.l.b16 %v40
    %v122 = vunpack.c.l.b16 %v41
    %v123 = vunpack.c.l.b16 %v42
    %v124 = vunpack.c.l.b16 %v43
    %v125 = vunpack.c.l.b16 %v44
    %v126 = vunpack.c.l.b16 %v45
    %v127 = vunpack.c.l.b16 %v46
    %v128 = vunpack.c.l.b16 %v47
    %v129 = vunpack.c.l.b16 %v48
    %v130 = vunpack.c.l.b16 %v49
    %v131 = vunpack.c.l.b16 %v50
    %v132 = vunpack.c.l.b16 %v51
    %v133 = vunpack.c.l.b16 %v52
    %v134 = vunpack.c.l.b16 %v53
    %v135 = vunpack.c.l.b16 %v54
    %v136 = vunpack.c.l.b16 %v55
    %v137 = vunpack.c.l.b16 %v56
    %v138 = vunpack.c.l.b16 %v57
    %v139 = vunpack.c.l.b16 %v58
    %v140 = vunpack.c.l.b16 %v59
    %v141 = vunpack.c.l.b16 %v60
    %v142 = vunpack.c.l.b16 %v61
    %v143 = vunpack.c.l.b16 %v62
    %v144 = vunpack.c.l.b16 %v63
    %v145 = vunpack.c.l.b16 %v64
    %v146 = vunpack.c.l.b16 %v65
    %v147 = vunpack.c.l.b16 %v66
    %v148 = vunpack.c.l.b16 %v67
    %v149 = vpack.c.b16 %v118, %v117
    %v150 = vpack.c.b16 %v120, %v119
    %v151 = vpack.c.b16 %v122, %v121
    %v152 = vpack.c.b16 %v124, %v123
    %v153 = vpack.c.b16 %v126, %v125
    %v154 = vpack.c.b16 %v128, %v127
    %v155 = vpack.c.b16 %v130, %v129
    %v156 = vpack.c.b16 %v132, %v131
    %v157 = vpack.c.b16 %v134, %v133
    %v158 = vpack.c.b16 %v136, %v135
    %v159 = vpack.c.b16 %v138, %v137
    %v160 = vpack.c.b16 %v140, %v139
    %v161 = vpack.c.b16 %v142, %v141
    %v162 = vpack.c.b16 %v144, %v143
    %v163 = vpack.c.b16 %v146, %v145
    %v164 = vpack.c.b16 %v148, %v147
    %181 = vmatprep.subr.bf16.mxu0 0
    %182 = vmatpush1.bf16.msra.mxu0 %v156
    %183 = vmatprep.subr.bf16.mxu0 0
    %184 = vmatpush1.bf16.msra.mxu0 %v155
    %185 = vmatprep.subr.bf16.mxu0 0
    %186 = vmatpush1.bf16.msra.mxu0 %v154
    %187 = vmatprep.subr.bf16.mxu0 0
    %188 = vmatpush1.bf16.msra.mxu0 %v153
    %189 = vmatprep.subr.bf16.mxu0 0
    %190 = vmatpush1.bf16.msra.mxu0 %v152
    %191 = vmatprep.subr.bf16.mxu0 0
    %192 = vmatpush1.bf16.msra.mxu0 %v151
    %193 = vmatprep.subr.bf16.mxu0 0
    %194 = vmatpush1.bf16.msra.mxu0 %v150
    %195 = vmatprep.subr.bf16.mxu0 0
    %196 = vmatpush1.bf16.msra.mxu0 %v149
    %197 = vmatprep.subr.bf16.mxu0 0
    %198 = vmatpush2.bf16.msra.mxu0 %v164
    %199 = vmatprep.subr.bf16.mxu0 0
    %200 = vmatpush2.bf16.msra.mxu0 %v163
    %201 = vmatprep.subr.bf16.mxu0 0
    %202 = vmatpush2.bf16.msra.mxu0 %v162
    %203 = vmatprep.subr.bf16.mxu0 0
    %204 = vmatpush2.bf16.msra.mxu0 %v161
    %205 = vmatprep.subr.bf16.mxu0 0
    %206 = vmatpush2.bf16.msra.mxu0 %v160
    %207 = vmatprep.subr.bf16.mxu0 0
    %208 = vmatpush2.bf16.msra.mxu0 %v159
    %209 = vmatprep.subr.bf16.mxu0 0
    %210 = vmatpush2.bf16.msra.mxu0 %v158
    %211 = vmatprep.subr.bf16.mxu0 0
    %212 = vmatpush2.bf16.msra.mxu0 %v157
    %213 = vmatprep.mubr.bf16.mxu0 %v82
    %214 = vmatmul.mubr.bf16.gmra.mxu0 %v81
    %v215 = vpop.f32.mrf.mxu0
    %v216 = vadd.f32 %v73, %v215
    %v217 = vpop.f32.mrf.mxu0
    %v218 = vpop.f32.mrf.mxu0
    %v219 = vadd.f32 %v73, %v218
    %v220 = vpop.f32.mrf.mxu0
    %221 = vdwg.mxu0
    %v222 = vmax.f32 %v216, 0.0
    %v223 = vmax.f32 %v219, 0.0
    %v224 = vpack.c.bf16 %v223, %v222
    %v225 = vld [vmem:[%s4] sm:$0xf]
    %v226 = vld [vmem:[%s4 + $0x4] sm:$0xf]
    %v227 = vld [vmem:[%s4 + $0x8] sm:$0xf]
    %v228 = vld [vmem:[%s4 + $0xc] sm:$0xf]
    %v229 = vld [vmem:[%s4 + $0x10] sm:$0xf]
    %v230 = vld [vmem:[%s4 + $0x14] sm:$0xf]
    %v231 = vld [vmem:[%s4 + $0x18] sm:$0xf]
    %v232 = vld [vmem:[%s4 + $0x1c] sm:$0xf]
    %v233 = vld [vmem:[%s4 + $0x20] sm:$0xf]
    %v234 = vld [vmem:[%s4 + $0x24] sm:$0xf]
    %v235 = vld [vmem:[%s4 + $0x28] sm:$0xf]
    %v236 = vld [vmem:[%s4 + $0x2c] sm:$0xf]
    %v237 = vld [vmem:[%s4 + $0x30] sm:$0xf]
    %v238 = vld [vmem:[%s4 + $0x34] sm:$0xf]
    %v239 = vld [vmem:[%s4 + $0x38] sm:$0xf]
    %v240 = vld [vmem:[%s4 + $0x3c] sm:$0xf]
    %v241 = vld [vmem:[%s5] sm:$0x1]
    %v243 = vlaneseq
    %v244 = vshrl.u32 %v243, 7
    %v245 = vsub.s32 0, %v244
    %v246 = vrot.slane %v241, %v245
    %v264 = vunpack.c.l.b16 %v225
    %v265 = vunpack.c.l.b16 %v226
    %v266 = vunpack.c.l.b16 %v227
    %v267 = vunpack.c.l.b16 %v228
    %v268 = vunpack.c.l.b16 %v229
    %v269 = vunpack.c.l.b16 %v230
    %v270 = vunpack.c.l.b16 %v231
    %v271 = vunpack.c.l.b16 %v232
    %v272 = vunpack.c.l.b16 %v233
    %v273 = vunpack.c.l.b16 %v234
    %v274 = vunpack.c.l.b16 %v235
    %v275 = vunpack.c.l.b16 %v236
    %v276 = vunpack.c.l.b16 %v237
    %v277 = vunpack.c.l.b16 %v238
    %v278 = vunpack.c.l.b16 %v239
    %v279 = vunpack.c.l.b16 %v240
    %v280 = vpack.c.b16 %v265, %v264
    %v281 = vpack.c.b16 %v267, %v266
    %v282 = vpack.c.b16 %v269, %v268
    %v283 = vpack.c.b16 %v271, %v270
    %v284 = vpack.c.b16 %v273, %v272
    %v285 = vpack.c.b16 %v275, %v274
    %v286 = vpack.c.b16 %v277, %v276
    %v287 = vpack.c.b16 %v279, %v278
    %296 = vmatprep.subr.bf16.mxu0 0
    %297 = vmatpush1.bf16.msra.mxu0 %v287
    %298 = vmatprep.subr.bf16.mxu0 0
    %299 = vmatpush1.bf16.msra.mxu0 %v286
    %300 = vmatprep.subr.bf16.mxu0 0
    %301 = vmatpush1.bf16.msra.mxu0 %v285
    %302 = vmatprep.subr.bf16.mxu0 0
    %303 = vmatpush1.bf16.msra.mxu0 %v284
    %304 = vmatprep.subr.bf16.mxu0 0
    %305 = vmatpush1.bf16.msra.mxu0 %v283
    %306 = vmatprep.subr.bf16.mxu0 0
    %307 = vmatpush1.bf16.msra.mxu0 %v282
    %308 = vmatprep.subr.bf16.mxu0 0
    %309 = vmatpush1.bf16.msra.mxu0 %v281
    %310 = vmatprep.subr.bf16.mxu0 0
    %311 = vmatpush1.bf16.msra.mxu0 %v280
    %312 = vmatprep.subr.bf16.mxu0 0
    %313 = vmatpush2.bf16.msra.mxu0 0
    %314 = vmatprep.subr.bf16.mxu0 0
    %315 = vmatpush2.bf16.msra.mxu0 0
    %316 = vmatprep.subr.bf16.mxu0 0
    %317 = vmatpush2.bf16.msra.mxu0 0
    %318 = vmatprep.subr.bf16.mxu0 0
    %319 = vmatpush2.bf16.msra.mxu0 0
    %320 = vmatprep.subr.bf16.mxu0 0
    %321 = vmatpush2.bf16.msra.mxu0 0
    %322 = vmatprep.subr.bf16.mxu0 0
    %323 = vmatpush2.bf16.msra.mxu0 0
    %324 = vmatprep.subr.bf16.mxu0 0
    %325 = vmatpush2.bf16.msra.mxu0 0
    %326 = vmatprep.subr.bf16.mxu0 0
    %327 = vmatpush2.bf16.msra.mxu0 0
    %328 = vmatprep.mubr.bf16.mxu0 0
    %329 = vmatmul.mubr.bf16.gmra.mxu0 %v224
    %v330 = vpop.f32.mrf.mxu0
    %v331 = vadd.f32 %v246, %v330
    %v332 = vpop.f32.mrf.mxu0
    %v333 = vpop.f32.mrf.mxu0
    %v334 = vadd.f32 %v246, %v333
    %v335 = vpop.f32.mrf.mxu0
    %336 = vdwg.mxu0
    %v337 = vmax.f32 %v331, 0.0
    %v338 = vmax.f32 %v334, 0.0
    %v339 = vpack.c.bf16 %v338, %v337
    %v341 = vunpack.c.l.b16 %v339
    %v342 = vunpack.c.h.b16 %v339
    %v343 = vpack.c.b16 %v341, %v341
    %v344 = vpack.c.b16 %v342, %v342
    %347 = vst [vmem:[%s8] sm:$0xf] %v343
    %348 = vst [vmem:[%s8 + $0x4] sm:$0xf] %v344
    %v349 = vld [vmem:[%s6] sm:$0xff]
    %v350 = vld [vmem:[%s6 + $0x8] sm:$0xff]
    %v351 = vld [vmem:[%s6 + $0x10] sm:$0xff]
    %v352 = vld [vmem:[%s6 + $0x18] sm:$0xff]
    %v353 = vld [vmem:[%s6 + $0x20] sm:$0xff]
    %v354 = vld [vmem:[%s6 + $0x28] sm:$0xff]
    %v355 = vld [vmem:[%s6 + $0x30] sm:$0xff]
    %v356 = vld [vmem:[%s6 + $0x38] sm:$0xff]
    %v357 = vld [vmem:[%s6 + $0x40] sm:$0xff]
    %v358 = vld [vmem:[%s6 + $0x48] sm:$0xff]
    %v359 = vld [vmem:[%s6 + $0x50] sm:$0xff]
    %v360 = vld [vmem:[%s6 + $0x58] sm:$0xff]
    %v361 = vld [vmem:[%s6 + $0x60] sm:$0xff]
    %v362 = vld [vmem:[%s6 + $0x68] sm:$0xff]
    %v363 = vld [vmem:[%s6 + $0x70] sm:$0xff]
    %v364 = vld [vmem:[%s6 + $0x78] sm:$0xff]
    %v365 = vld [vmem:[%s7] sm:$0x3]
    %v367 = vlaneseq
    %v368 = vshrl.u32 %v367, 7
    %v369 = vsub.s32 0, %v368
    %v370 = vrot.slane %v365, %v369
    %v371 = vlaneseq
    %v372 = vshrl.u32 %v371, 7
    %v373 = vsub.s32 1, %v372
    %v374 = vrot.slane %v365, %v373
    %v393 = vunpack.c.l.b16 %v349
    %v394 = vunpack.c.h.b16 %v349
    %v395 = vunpack.c.l.b16 %v350
    %v396 = vunpack.c.h.b16 %v350
    %v397 = vunpack.c.l.b16 %v351
    %v398 = vunpack.c.h.b16 %v351
    %v399 = vunpack.c.l.b16 %v352
    %v400 = vunpack.c.h.b16 %v352
    %v401 = vunpack.c.l.b16 %v353
    %v402 = vunpack.c.h.b16 %v353
    %v403 = vunpack.c.l.b16 %v354
    %v404 = vunpack.c.h.b16 %v354
    %v405 = vunpack.c.l.b16 %v355
    %v406 = vunpack.c.h.b16 %v355
    %v407 = vunpack.c.l.b16 %v356
    %v408 = vunpack.c.h.b16 %v356
    %v409 = vunpack.c.l.b16 %v357
    %v410 = vunpack.c.h.b16 %v357
    %v411 = vunpack.c.l.b16 %v358
    %v412 = vunpack.c.h.b16 %v358
    %v413 = vunpack.c.l.b16 %v359
    %v414 = vunpack.c.h.b16 %v359
    %v415 = vunpack.c.l.b16 %v360
    %v416 = vunpack.c.h.b16 %v360
    %v417 = vunpack.c.l.b16 %v361
    %v418 = vunpack.c.h.b16 %v361
    %v419 = vunpack.c.l.b16 %v362
    %v420 = vunpack.c.h.b16 %v362
    %v421 = vunpack.c.l.b16 %v363
    %v422 = vunpack.c.h.b16 %v363
    %v423 = vunpack.c.l.b16 %v364
    %v424 = vunpack.c.h.b16 %v364
    %v425 = vpack.c.b16 %v395, %v393
    %v426 = vpack.c.b16 %v396, %v394
    %v427 = vpack.c.b16 %v399, %v397
    %v428 = vpack.c.b16 %v400, %v398
    %v429 = vpack.c.b16 %v403, %v401
    %v430 = vpack.c.b16 %v404, %v402
    %v431 = vpack.c.b16 %v407, %v405
    %v432 = vpack.c.b16 %v408, %v406
    %v433 = vpack.c.b16 %v411, %v409
    %v434 = vpack.c.b16 %v412, %v410
    %v435 = vpack.c.b16 %v415, %v413
    %v436 = vpack.c.b16 %v416, %v414
    %v437 = vpack.c.b16 %v419, %v417
    %v438 = vpack.c.b16 %v420, %v418
    %v439 = vpack.c.b16 %v423, %v421
    %v440 = vpack.c.b16 %v424, %v422
    %457 = vmatprep.subr.bf16.mxu0 %v440
    %458 = vmatpush1.bf16.msra.mxu0 %v439
    %459 = vmatprep.subr.bf16.mxu0 %v438
    %460 = vmatpush1.bf16.msra.mxu0 %v437
    %461 = vmatprep.subr.bf16.mxu0 %v436
    %462 = vmatpush1.bf16.msra.mxu0 %v435
    %463 = vmatprep.subr.bf16.mxu0 %v434
    %464 = vmatpush1.bf16.msra.mxu0 %v433
    %465 = vmatprep.subr.bf16.mxu0 %v432
    %466 = vmatpush1.bf16.msra.mxu0 %v431
    %467 = vmatprep.subr.bf16.mxu0 %v430
    %468 = vmatpush1.bf16.msra.mxu0 %v429
    %469 = vmatprep.subr.bf16.mxu0 %v428
    %470 = vmatpush1.bf16.msra.mxu0 %v427
    %471 = vmatprep.subr.bf16.mxu0 %v426
    %472 = vmatpush1.bf16.msra.mxu0 %v425
    %473 = vmatprep.subr.bf16.mxu0 0
    %474 = vmatpush2.bf16.msra.mxu0 0
    %475 = vmatprep.subr.bf16.mxu0 0
    %476 = vmatpush2.bf16.msra.mxu0 0
    %477 = vmatprep.subr.bf16.mxu0 0
    %478 = vmatpush2.bf16.msra.mxu0 0
    %479 = vmatprep.subr.bf16.mxu0 0
    %480 = vmatpush2.bf16.msra.mxu0 0
    %481 = vmatprep.subr.bf16.mxu0 0
    %482 = vmatpush2.bf16.msra.mxu0 0
    %483 = vmatprep.subr.bf16.mxu0 0
    %484 = vmatpush2.bf16.msra.mxu0 0
    %485 = vmatprep.subr.bf16.mxu0 0
    %486 = vmatpush2.bf16.msra.mxu0 0
    %487 = vmatprep.subr.bf16.mxu0 0
    %488 = vmatpush2.bf16.msra.mxu0 0
    %489 = vmatprep.mubr.bf16.mxu0 0
    %490 = vmatmul.mubr.bf16.gmra.mxu0 %v339
    %v491 = vpop.f32.mrf.mxu0
    %v492 = vadd.f32 %v370, %v491
    %v493 = vpop.f32.mrf.mxu0
    %v494 = vadd.f32 %v374, %v493
    %v495 = vpop.f32.mrf.mxu0
    %v496 = vadd.f32 %v370, %v495
    %v497 = vpop.f32.mrf.mxu0
    %v498 = vadd.f32 %v374, %v497
    %499 = vdwg.mxu0
    %500 = vst [vmem:[#allocation2] sm:$0xff] %v492
    %501 = vst [vmem:[#allocation2 + $0x8] sm:$0xff] %v494
    %502 = vst [vmem:[#allocation2 + $0x10] sm:$0xff] %v496
    %503 = vst [vmem:[#allocation2 + $0x18] sm:$0xff] %v498
    %v504 = vlaneseq
    %v505 = vand.u32 %v504, 127
    %v506 = vand.u32 %v505, 3
    %vm507 = vcmp.lt.s32.totalorder %v506, 2
    %v508 = vand.u32 %v506, 1
    %vm509 = vcmp.eq.s32.totalorder %v508, 0
    %vm510 = vcmp.eq.s32.totalorder %v506, 0
    %vm511 = vcmp.eq.s32.totalorder %v506, 1
    %v512 = vsel %vm511, 0.1, 0.2
    %v513 = vsel %vm510, 0.1, %v512
    %v514 = vmul.f32 %v494, %v513
    %v515 = vmul.f32 %v498, %v513
    %v516 = vld [vmem:[%s1] sm:$0xff]
    %v517 = vld [vmem:[%s1 + $0x8] sm:$0xff]
    %520 = vrot.lane.b32.xlu0 %v516, 2
    %v521 = vpop.permute.xlu0 %520
    %522 = vrot.lane.b32.xlu0 %v517, 2
    %v523 = vpop.permute.xlu0 %522
    %v526 = vsub.f32 %v516, %v521
    %v527 = vsub.f32 %v517, %v523
    %v528 = vadd.f32 %v526, 1.0
    %v529 = vadd.f32 %v527, 1.0
    %v530 = vmul.f32 %v528, 0.5
    %v531 = vmul.f32 %v529, 0.5
    %534 = vrot.lane.b32.xlu0 %v530, 126
    %v535 = vpop.permute.xlu0 %534
    %536 = vrot.lane.b32.xlu0 %v531, 126
    %v537 = vpop.permute.xlu0 %536
    %v540 = vadd.f32 %v516, %v535
    %v541 = vadd.f32 %v517, %v537
    %v542 = vsel %vm509, 1, 0
    %vm543 = vcmp.eq.s32.totalorder %v542, 1
    %545 = vset.pattern.permute.xlu0 2
    %546 = vperm.xlu0 %545, %v528
    %v547 = vpop.permute.xlu0 %546
    %550 = vset.pattern.permute.xlu0 2
    %551 = vperm.xlu0 %550, %v529
    %v552 = vpop.permute.xlu0 %551
    %554 = vset.pattern.permute.xlu0 3
    %555 = vperm.xlu0 %554, %v528
    %v556 = vpop.permute.xlu0 %555
    %558 = vset.pattern.permute.xlu0 3
    %559 = vperm.xlu0 %558, %v529
    %v560 = vpop.permute.xlu0 %559
    %v562 = vsel %vm543, %v547, %v556
    %v563 = vsel %vm543, %v552, %v560
    %565 = vset.pattern.permute.xlu0 0
    %566 = vperm.xlu0 %565, %v540
    %v567 = vpop.permute.xlu0 %566
    %570 = vset.pattern.permute.xlu0 0
    %571 = vperm.xlu0 %570, %v541
    %v572 = vpop.permute.xlu0 %571
    %574 = vset.pattern.permute.xlu0 1
    %575 = vperm.xlu0 %574, %v540
    %v576 = vpop.permute.xlu0 %575
    %578 = vset.pattern.permute.xlu0 1
    %579 = vperm.xlu0 %578, %v541
    %v580 = vpop.permute.xlu0 %579
    %v582 = vsel %vm543, %v567, %v576
    %v583 = vsel %vm543, %v572, %v580
    %584 = vrot.lane.b32.xlu0 %v514, 2
    %v585 = vpop.permute.xlu0 %584
    %586 = vrot.lane.b32.xlu0 %v515, 2
    %v587 = vpop.permute.xlu0 %586
    %v588 = vsel %vm507, 1, 0
    %vm589 = vcmp.eq.s32.totalorder %v588, 1
    %v590 = vsel %vm589, %v514, %v585
    %v591 = vsel %vm589, %v515, %v587
    %592 = vrot.lane.b32.xlu0 %v514, 126
    %v593 = vpop.permute.xlu0 %592
    %594 = vrot.lane.b32.xlu0 %v515, 126
    %v595 = vpop.permute.xlu0 %594
    %v596 = vsel %vm589, %v593, %v514
    %v597 = vsel %vm589, %v595, %v515
    %v598 = vmin.f32 %v596, 4.1351666
    %v599 = vmin.f32 %v597, 4.1351666
    %v600 = vmul.f32 %v590, %v562
    %v601 = vmul.f32 %v591, %v563
    %v602 = vadd.f32 %v600, %v582
    %v603 = vadd.f32 %v601, %v583
    %v604 = vmul.f32 %v598, 1.442695
    %v605 = vpow.pop %v604
    %v606 = vmul.f32 %v599, 1.442695
    %v607 = vpow.pop %v606
    %v608 = vmul.f32 %v605, 0.5
    %v609 = vmul.f32 %v607, 0.5
    %v610 = vmul.f32 %v608, %v562
    %v611 = vmul.f32 %v609, %v563
    %v612 = vsub.f32 %v602, %v610
    %v613 = vsub.f32 %v603, %v611
    %v614 = vadd.f32 %v602, %v610
    %v615 = vadd.f32 %v603, %v611
    %v616 = vsub.f32 %v614, 1.0
    %v617 = vsub.f32 %v615, 1.0
    %v618 = vsel %vm589, %v612, %v616
    %v619 = vsel %vm589, %v613, %v617
    %v620 = vmax.f32 %v618, 0.0
    %v621 = vmax.f32 %v619, 0.0
    %v622 = vmin.f32 %v620, 63.0
    %v623 = vmin.f32 %v621, 63.0
    %624 = vst [vmem:[%s10] sm:$0xff] %v622
    %625 = vst [vmem:[%s10 + $0x8] sm:$0xff] %v623
    // Predicated region
    $region34: #{roi_box_cascade_head_forward.3} parent=1 // pred_check
      _
    $region35: #{roi_box_cascade_head_forward.3} parent=1 // pred_check_branch
      %627 = sbr.rel (0) target = $region37
    $region36: #{roi_box_cascade_head_forward.3} parent=1 // pred_region
      _
    $region37: #{roi_box_cascade_head_forward.3} parent=1 // pred_fallthru
      _
    // Predicated region
    $region38: #{roi_box_cascade_head_forward.3} parent=1 // pred_check
      _
    $region39: #{roi_box_cascade_head_forward.3} parent=1 // pred_check_branch
      %629 = sbr.rel (0) target = $region41
    $region40: #{roi_box_cascade_head_forward.3} parent=1 // pred_region
      %s631 = ssub.s32 512, 512
      %632 = vsyncadd [#allocation3], %s631
      %s633 = sshll.u32 [#allocation2], 4
      %s634 = int_to_ptr.vmem [resolvable:$true] %s633
      %639 = dma.vmem_to_hbm [thread:$0]  %s634, 512, %s9, [#allocation3], 256, 256, 16
    $region41: #{roi_box_cascade_head_forward.3} parent=1 // pred_fallthru
      _
    // Predicated region
    $region42: #{roi_box_cascade_head_forward.3} parent=1 // pred_check
      _
    $region43: #{roi_box_cascade_head_forward.3} parent=1 // pred_check_branch
      %641 = sbr.rel (0) target = $region45
    $region44: #{roi_box_cascade_head_forward.3} parent=1 // pred_region
      _
    $region45: #{roi_box_cascade_head_forward.3} parent=1 // pred_fallthru
      _
    // Predicated region
    $region46: #{roi_box_cascade_head_forward.3} parent=1 // pred_check
      _
    $region47: #{roi_box_cascade_head_forward.3} parent=1 // pred_check_branch
      %643 = sbr.rel (0) target = $region49
    $region48: #{roi_box_cascade_head_forward.3} parent=1 // pred_region
      _
    $region49: #{roi_box_cascade_head_forward.3} parent=1 // pred_fallthru
      _
    // Predicated region
    $region50: #{roi_box_cascade_head_forward.3} parent=1 // pred_check
      _
    $region51: #{roi_box_cascade_head_forward.3} parent=1 // pred_check_branch
      %645 = sbr.rel (0) target = $region53
    $region52: #{roi_box_cascade_head_forward.3} parent=1 // pred_region
      %646 = dma.done [#allocation3], 512
    $region53: #{roi_box_cascade_head_forward.3} parent=1 // pred_fallthru
      _
    // Predicated region
    $region54: #{roi_box_cascade_head_forward.3} parent=1 // pred_check
      _
    $region55: #{roi_box_cascade_head_forward.3} parent=1 // pred_check_branch
      %648 = sbr.rel (0) target = $region57
    $region56: #{roi_box_cascade_head_forward.3} parent=1 // pred_region
      _
    $region57: #{roi_box_cascade_head_forward.3} parent=1 // pred_fallthru
      _
    %649 = vsyncpa [#allocation3], 1

// kernel: roi_box_cascade_head_forward.4
$region0: #{roi_box_cascade_head_forward.4}
  #allocation0 [shape = 'u32[]', space=smem, size = 0x4, offset = 0x4, fixed_abs, tag = 'smem constant byte address 0x4 - core index']
  #allocation1 [shape = 'u32[144,128]{1,0:T(1,128)}', space=vmem, size = 0x12000, scoped, tag = 'internal scratch']
  %s0 = inlined_call_operand.vmem [shape: bf16[16,256], index: 0, kind: input, shape index: {}]
  %s1 = inlined_call_operand.vmem [shape: f32[16,4], index: 1, kind: input, shape index: {}]
  %s2 = inlined_call_operand.vmem [shape: bf16[256,128], index: 2, kind: input, shape index: {}]
  %s3 = inlined_call_operand.vmem [shape: f32[1,128], index: 3, kind: input, shape index: {}]
  %s4 = inlined_call_operand.vmem [shape: bf16[128,128], index: 4, kind: input, shape index: {}]
  %s5 = inlined_call_operand.vmem [shape: f32[1,128], index: 5, kind: input, shape index: {}]
  %s6 = inlined_call_operand.vmem [shape: bf16[128,256], index: 6, kind: input, shape index: {}]
  %s7 = inlined_call_operand.vmem [shape: f32[1,256], index: 7, kind: input, shape index: {}]
  %s8 = inlined_call_operand.hbm [shape: f32[16,256], index: 8, kind: output, shape index: {0}]
  %s9 = inlined_call_operand.vmem [shape: f32[16,128], index: 9, kind: output, shape index: {1}]
  %10 = xla_tuple %s8, %s9
  %s11 = sld [smem:[#allocation0]]
  $region50: #{roi_box_cascade_head_forward.4} parent=0
    _
  %s13 = ssub.s32 1, %s11
  %s14 = scalar_select 0, %s13, %s11
  $region1: #{roi_box_cascade_head_forward.4} parent=0
    #allocation2 [shape = 'u8[16384]{0}', space=vmem, size = 0x4000, scoped, tag = 'output window, operand 0, single buffered']
    #allocation3 [shape = 's32[1]{0}', space=sflag, size = 0x4, scoped, tag = 'scoped memory for roi_box_cascade_head_forward.4']
    %15 = vsyncpa [#allocation3], 0
    // Predicated region
    $region2: #{roi_box_cascade_head_forward.4} parent=1 // pred_check
      _
    $region3: #{roi_box_cascade_head_forward.4} parent=1 // pred_check_branch
      %17 = sbr.rel (0) target = $region5
    $region4: #{roi_box_cascade_head_forward.4} parent=1 // pred_region
      _
    $region5: #{roi_box_cascade_head_forward.4} parent=1 // pred_fallthru
      _
    // Predicated region
    $region6: #{roi_box_cascade_head_forward.4} parent=1 // pred_check
      _
    $region7: #{roi_box_cascade_head_forward.4} parent=1 // pred_check_branch
      %19 = sbr.rel (0) target = $region9
    $region8: #{roi_box_cascade_head_forward.4} parent=1 // pred_region
      _
    $region9: #{roi_box_cascade_head_forward.4} parent=1 // pred_fallthru
      _
    // Predicated region
    $region10: #{roi_box_cascade_head_forward.4} parent=1 // pred_check
      _
    $region11: #{roi_box_cascade_head_forward.4} parent=1 // pred_check_branch
      %21 = sbr.rel (0) target = $region13
    $region12: #{roi_box_cascade_head_forward.4} parent=1 // pred_region
      _
    $region13: #{roi_box_cascade_head_forward.4} parent=1 // pred_fallthru
      _
    // Predicated region
    $region14: #{roi_box_cascade_head_forward.4} parent=1 // pred_check
      _
    $region15: #{roi_box_cascade_head_forward.4} parent=1 // pred_check_branch
      %23 = sbr.rel (0) target = $region17
    $region16: #{roi_box_cascade_head_forward.4} parent=1 // pred_region
      _
    $region17: #{roi_box_cascade_head_forward.4} parent=1 // pred_fallthru
      _
    // Predicated region
    $region18: #{roi_box_cascade_head_forward.4} parent=1 // pred_check
      _
    $region19: #{roi_box_cascade_head_forward.4} parent=1 // pred_check_branch
      %25 = sbr.rel (0) target = $region21
    $region20: #{roi_box_cascade_head_forward.4} parent=1 // pred_region
      _
    $region21: #{roi_box_cascade_head_forward.4} parent=1 // pred_fallthru
      _
    // Predicated region
    $region22: #{roi_box_cascade_head_forward.4} parent=1 // pred_check
      _
    $region23: #{roi_box_cascade_head_forward.4} parent=1 // pred_check_branch
      %27 = sbr.rel (0) target = $region25
    $region24: #{roi_box_cascade_head_forward.4} parent=1 // pred_region
      _
    $region25: #{roi_box_cascade_head_forward.4} parent=1 // pred_fallthru
      _
    // Predicated region
    $region26: #{roi_box_cascade_head_forward.4} parent=1 // pred_check
      _
    $region27: #{roi_box_cascade_head_forward.4} parent=1 // pred_check_branch
      %29 = sbr.rel (0) target = $region29
    $region28: #{roi_box_cascade_head_forward.4} parent=1 // pred_region
      _
    $region29: #{roi_box_cascade_head_forward.4} parent=1 // pred_fallthru
      _
    // Predicated region
    $region30: #{roi_box_cascade_head_forward.4} parent=1 // pred_check
      _
    $region31: #{roi_box_cascade_head_forward.4} parent=1 // pred_check_branch
      %31 = sbr.rel (0) target = $region33
    $region32: #{roi_box_cascade_head_forward.4} parent=1 // pred_region
      _
    $region33: #{roi_box_cascade_head_forward.4} parent=1 // pred_fallthru
      _
    %v33 = vld [vmem:[%s0] sm:$0xff]
    %v34 = vld [vmem:[%s0 + $0x8] sm:$0xff]
    %v35 = vld [vmem:[%s2] sm:$0xf]
    %v36 = vld [vmem:[%s2 + $0x4] sm:$0xf]
    %v37 = vld [vmem:[%s2 + $0x8] sm:$0xf]
    %v38 = vld [vmem:[%s2 + $0xc] sm:$0xf]
    %v39 = vld [vmem:[%s2 + $0x10] sm:$0xf]
    %v40 = vld [vmem:[%s2 + $0x14] sm:$0xf]
    %v41 = vld [vmem:[%s2 + $0x18] sm:$0xf]
    %v42 = vld [vmem:[%s2 + $0x1c] sm:$0xf]
    %v43 = vld [vmem:[%s2 + $0x20] sm:$0xf]
    %v44 = vld [vmem:[%s2 + $0x24] sm:$0xf]
    %v45 = vld [vmem:[%s2 + $0x28] sm:$0xf]
    %v46 = vld [vmem:[%s2 + $0x2c] sm:$0xf]
    %v47 = vld [vmem:[%s2 + $0x30] sm:$0xf]
    %v48 = vld [vmem:[%s2 + $0x34] sm:$0xf]
    %v49 = vld [vmem:[%s2 + $0x38] sm:$0xf]
    %v50 = vld [vmem:[%s2 + $0x3c] sm:$0xf]
    %v51 = vld [vmem:[%s2 + $0x40] sm:$0xf]
    %v52 = vld [vmem:[%s2 + $0x44] sm:$0xf]
    %v53 = vld [vmem:[%s2 + $0x48] sm:$0xf]
    %v54 = vld [vmem:[%s2 + $0x4c] sm:$0xf]
    %v55 = vld [vmem:[%s2 + $0x50] sm:$0xf]
    %v56 = vld [vmem:[%s2 + $0x54] sm:$0xf]
    %v57 = vld [vmem:[%s2 + $0x58] sm:$0xf]
    %v58 = vld [vmem:[%s2 + $0x5c] sm:$0xf]
    %v59 = vld [vmem:[%s2 + $0x60] sm:$0xf]
    %v60 = vld [vmem:[%s2 + $0x64] sm:$0xf]
    %v61 = vld [vmem:[%s2 + $0x68] sm:$0xf]
    %v62 = vld [vmem:[%s2 + $0x6c] sm:$0xf]
    %v63 = vld [vmem:[%s2 + $0x70] sm:$0xf]
    %v64 = vld [vmem:[%s2 + $0x74] sm:$0xf]
    %v65 = vld [vmem:[%s2 + $0x78] sm:$0xf]
    %v66 = vld [vmem:[%s2 + $0x7c] sm:$0xf]
    %v67 = vld [vmem:[%s3] sm:$0x1]
    %v69 = vlaneseq
    %v70 = vshrl.u32 %v69, 7
    %v71 = vsub.s32 0, %v70
    %v72 = vrot.slane %v67, %v71
    %v76 = vunpack.c.l.b16 %v33
    %v77 = vunpack.c.h.b16 %v33
    %v78 = vunpack.c.l.b16 %v34
    %v79 = vunpack.c.h.b16 %v34
    %v80 = vpack.c.b16 %v78, %v76
    %v81 = vpack.c.b16 %v79, %v77
    %v116 = vunpack.c.l.b16 %v35
    %v117 = vunpack.c.l.b16 %v36
    %v118 = vunpack.c.l.b16 %v37
    %v119 = vunpack.c.l.b16 %v38
    %v120 = vunpack.c.l.b16 %v39
    %v121 = vunpack.c.l.b16 %v40
    %v122 = vunpack.c.l.b16 %v41
    %v123 = vunpack.c.l.b16 %v42
    %v124 = vunpack.c.l.b16 %v43
    %v125 = vunpack.c.l.b16 %v44
    %v126 = vunpack.c.l.b16 %v45
    %v127 = vunpack.c.l.b16 %v46
    %v128 = vunpack.c.l.b16 %v47
    %v129 = vunpack.c.l.b16 %v48
    %v130 = vunpack.c.l.b16 %v49
    %v131 = vunpack.c.l.b16 %v50
    %v132 = vunpack.c.l.b16 %v51
    %v133 = vunpack.c.l.b16 %v52
    %v134 = vunpack.c.l.b16 %v53
    %v135 = vunpack.c.l.b16 %v54
    %v136 = vunpack.c.l.b16 %v55
    %v137 = vunpack.c.l.b16 %v56
    %v138 = vunpack.c.l.b16 %v57
    %v139 = vunpack.c.l.b16 %v58
    %v140 = vunpack.c.l.b16 %v59
    %v141 = vunpack.c.l.b16 %v60
    %v142 = vunpack.c.l.b16 %v61
    %v143 = vunpack.c.l.b16 %v62
    %v144 = vunpack.c.l.b16 %v63
    %v145 = vunpack.c.l.b16 %v64
    %v146 = vunpack.c.l.b16 %v65
    %v147 = vunpack.c.l.b16 %v66
    %v148 = vpack.c.b16 %v117, %v116
    %v149 = vpack.c.b16 %v119, %v118
    %v150 = vpack.c.b16 %v121, %v120
    %v151 = vpack.c.b16 %v123, %v122
    %v152 = vpack.c.b16 %v125, %v124
    %v153 = vpack.c.b16 %v127, %v126
    %v154 = vpack.c.b16 %v129, %v128
    %v155 = vpack.c.b16 %v131, %v130
    %v156 = vpack.c.b16 %v133, %v132
    %v157 = vpack.c.b16 %v135, %v134
    %v158 = vpack.c.b16 %v137, %v136
    %v159 = vpack.c.b16 %v139, %v138
    %v160 = vpack.c.b16 %v141, %v140
    %v161 = vpack.c.b16 %v143, %v142
    %v162 = vpack.c.b16 %v145, %v144
    %v163 = vpack.c.b16 %v147, %v146
    %180 = vmatprep.subr.bf16.mxu0 0
    %181 = vmatpush1.bf16.msra.mxu0 %v155
    %182 = vmatprep.subr.bf16.mxu0 0
    %183 = vmatpush1.bf16.msra.mxu0 %v154
    %184 = vmatprep.subr.bf16.mxu0 0
    %185 = vmatpush1.bf16.msra.mxu0 %v153
    %186 = vmatprep.subr.bf16.mxu0 0
    %187 = vmatpush1.bf16.msra.mxu0 %v152
    %188 = vmatprep.subr.bf16.mxu0 0
    %189 = vmatpush1.bf16.msra.mxu0 %v151
    %190 = vmatprep.subr.bf16.mxu0 0
    %191 = vmatpush1.bf16.msra.mxu0 %v150
    %192 = vmatprep.subr.bf16.mxu0 0
    %193 = vmatpush1.bf16.msra.mxu0 %v149
    %194 = vmatprep.subr.bf16.mxu0 0
    %195 = vmatpush1.bf16.msra.mxu0 %v148
    %196 = vmatprep.subr.bf16.mxu0 0
    %197 = vmatpush2.bf16.msra.mxu0 %v163
    %198 = vmatprep.subr.bf16.mxu0 0
    %199 = vmatpush2.bf16.msra.mxu0 %v162
    %200 = vmatprep.subr.bf16.mxu0 0
    %201 = vmatpush2.bf16.msra.mxu0 %v161
    %202 = vmatprep.subr.bf16.mxu0 0
    %203 = vmatpush2.bf16.msra.mxu0 %v160
    %204 = vmatprep.subr.bf16.mxu0 0
    %205 = vmatpush2.bf16.msra.mxu0 %v159
    %206 = vmatprep.subr.bf16.mxu0 0
    %207 = vmatpush2.bf16.msra.mxu0 %v158
    %208 = vmatprep.subr.bf16.mxu0 0
    %209 = vmatpush2.bf16.msra.mxu0 %v157
    %210 = vmatprep.subr.bf16.mxu0 0
    %211 = vmatpush2.bf16.msra.mxu0 %v156
    %212 = vmatprep.mubr.bf16.mxu0 %v81
    %213 = vmatmul.mubr.bf16.gmra.mxu0 %v80
    %v214 = vpop.f32.mrf.mxu0
    %v215 = vadd.f32 %v72, %v214
    %v216 = vpop.f32.mrf.mxu0
    %v217 = vpop.f32.mrf.mxu0
    %v218 = vadd.f32 %v72, %v217
    %v219 = vpop.f32.mrf.mxu0
    %220 = vdwg.mxu0
    %v221 = vmax.f32 %v215, 0.0
    %v222 = vmax.f32 %v218, 0.0
    %v223 = vpack.c.bf16 %v222, %v221
    %v224 = vld [vmem:[%s4] sm:$0xf]
    %v225 = vld [vmem:[%s4 + $0x4] sm:$0xf]
    %v226 = vld [vmem:[%s4 + $0x8] sm:$0xf]
    %v227 = vld [vmem:[%s4 + $0xc] sm:$0xf]
    %v228 = vld [vmem:[%s4 + $0x10] sm:$0xf]
    %v229 = vld [vmem:[%s4 + $0x14] sm:$0xf]
    %v230 = vld [vmem:[%s4 + $0x18] sm:$0xf]
    %v231 = vld [vmem:[%s4 + $0x1c] sm:$0xf]
    %v232 = vld [vmem:[%s4 + $0x20] sm:$0xf]
    %v233 = vld [vmem:[%s4 + $0x24] sm:$0xf]
    %v234 = vld [vmem:[%s4 + $0x28] sm:$0xf]
    %v235 = vld [vmem:[%s4 + $0x2c] sm:$0xf]
    %v236 = vld [vmem:[%s4 + $0x30] sm:$0xf]
    %v237 = vld [vmem:[%s4 + $0x34] sm:$0xf]
    %v238 = vld [vmem:[%s4 + $0x38] sm:$0xf]
    %v239 = vld [vmem:[%s4 + $0x3c] sm:$0xf]
    %v240 = vld [vmem:[%s5] sm:$0x1]
    %v242 = vlaneseq
    %v243 = vshrl.u32 %v242, 7
    %v244 = vsub.s32 0, %v243
    %v245 = vrot.slane %v240, %v244
    %v263 = vunpack.c.l.b16 %v224
    %v264 = vunpack.c.l.b16 %v225
    %v265 = vunpack.c.l.b16 %v226
    %v266 = vunpack.c.l.b16 %v227
    %v267 = vunpack.c.l.b16 %v228
    %v268 = vunpack.c.l.b16 %v229
    %v269 = vunpack.c.l.b16 %v230
    %v270 = vunpack.c.l.b16 %v231
    %v271 = vunpack.c.l.b16 %v232
    %v272 = vunpack.c.l.b16 %v233
    %v273 = vunpack.c.l.b16 %v234
    %v274 = vunpack.c.l.b16 %v235
    %v275 = vunpack.c.l.b16 %v236
    %v276 = vunpack.c.l.b16 %v237
    %v277 = vunpack.c.l.b16 %v238
    %v278 = vunpack.c.l.b16 %v239
    %v279 = vpack.c.b16 %v264, %v263
    %v280 = vpack.c.b16 %v266, %v265
    %v281 = vpack.c.b16 %v268, %v267
    %v282 = vpack.c.b16 %v270, %v269
    %v283 = vpack.c.b16 %v272, %v271
    %v284 = vpack.c.b16 %v274, %v273
    %v285 = vpack.c.b16 %v276, %v275
    %v286 = vpack.c.b16 %v278, %v277
    %295 = vmatprep.subr.bf16.mxu0 0
    %296 = vmatpush1.bf16.msra.mxu0 %v286
    %297 = vmatprep.subr.bf16.mxu0 0
    %298 = vmatpush1.bf16.msra.mxu0 %v285
    %299 = vmatprep.subr.bf16.mxu0 0
    %300 = vmatpush1.bf16.msra.mxu0 %v284
    %301 = vmatprep.subr.bf16.mxu0 0
    %302 = vmatpush1.bf16.msra.mxu0 %v283
    %303 = vmatprep.subr.bf16.mxu0 0
    %304 = vmatpush1.bf16.msra.mxu0 %v282
    %305 = vmatprep.subr.bf16.mxu0 0
    %306 = vmatpush1.bf16.msra.mxu0 %v281
    %307 = vmatprep.subr.bf16.mxu0 0
    %308 = vmatpush1.bf16.msra.mxu0 %v280
    %309 = vmatprep.subr.bf16.mxu0 0
    %310 = vmatpush1.bf16.msra.mxu0 %v279
    %311 = vmatprep.subr.bf16.mxu0 0
    %312 = vmatpush2.bf16.msra.mxu0 0
    %313 = vmatprep.subr.bf16.mxu0 0
    %314 = vmatpush2.bf16.msra.mxu0 0
    %315 = vmatprep.subr.bf16.mxu0 0
    %316 = vmatpush2.bf16.msra.mxu0 0
    %317 = vmatprep.subr.bf16.mxu0 0
    %318 = vmatpush2.bf16.msra.mxu0 0
    %319 = vmatprep.subr.bf16.mxu0 0
    %320 = vmatpush2.bf16.msra.mxu0 0
    %321 = vmatprep.subr.bf16.mxu0 0
    %322 = vmatpush2.bf16.msra.mxu0 0
    %323 = vmatprep.subr.bf16.mxu0 0
    %324 = vmatpush2.bf16.msra.mxu0 0
    %325 = vmatprep.subr.bf16.mxu0 0
    %326 = vmatpush2.bf16.msra.mxu0 0
    %327 = vmatprep.mubr.bf16.mxu0 0
    %328 = vmatmul.mubr.bf16.gmra.mxu0 %v223
    %v329 = vpop.f32.mrf.mxu0
    %v330 = vadd.f32 %v245, %v329
    %v331 = vpop.f32.mrf.mxu0
    %v332 = vpop.f32.mrf.mxu0
    %v333 = vadd.f32 %v245, %v332
    %v334 = vpop.f32.mrf.mxu0
    %335 = vdwg.mxu0
    %v336 = vmax.f32 %v330, 0.0
    %v337 = vmax.f32 %v333, 0.0
    %v338 = vpack.c.bf16 %v337, %v336
    %v339 = vld [vmem:[%s6] sm:$0xff]
    %v340 = vld [vmem:[%s6 + $0x8] sm:$0xff]
    %v341 = vld [vmem:[%s6 + $0x10] sm:$0xff]
    %v342 = vld [vmem:[%s6 + $0x18] sm:$0xff]
    %v343 = vld [vmem:[%s6 + $0x20] sm:$0xff]
    %v344 = vld [vmem:[%s6 + $0x28] sm:$0xff]
    %v345 = vld [vmem:[%s6 + $0x30] sm:$0xff]
    %v346 = vld [vmem:[%s6 + $0x38] sm:$0xff]
    %v347 = vld [vmem:[%s6 + $0x40] sm:$0xff]
    %v348 = vld [vmem:[%s6 + $0x48] sm:$0xff]
    %v349 = vld [vmem:[%s6 + $0x50] sm:$0xff]
    %v350 = vld [vmem:[%s6 + $0x58] sm:$0xff]
    %v351 = vld [vmem:[%s6 + $0x60] sm:$0xff]
    %v352 = vld [vmem:[%s6 + $0x68] sm:$0xff]
    %v353 = vld [vmem:[%s6 + $0x70] sm:$0xff]
    %v354 = vld [vmem:[%s6 + $0x78] sm:$0xff]
    %v355 = vld [vmem:[%s7] sm:$0x3]
    %v357 = vlaneseq
    %v358 = vshrl.u32 %v357, 7
    %v359 = vsub.s32 0, %v358
    %v360 = vrot.slane %v355, %v359
    %v361 = vlaneseq
    %v362 = vshrl.u32 %v361, 7
    %v363 = vsub.s32 1, %v362
    %v364 = vrot.slane %v355, %v363
    %v383 = vunpack.c.l.b16 %v339
    %v384 = vunpack.c.h.b16 %v339
    %v385 = vunpack.c.l.b16 %v340
    %v386 = vunpack.c.h.b16 %v340
    %v387 = vunpack.c.l.b16 %v341
    %v388 = vunpack.c.h.b16 %v341
    %v389 = vunpack.c.l.b16 %v342
    %v390 = vunpack.c.h.b16 %v342
    %v391 = vunpack.c.l.b16 %v343
    %v392 = vunpack.c.h.b16 %v343
    %v393 = vunpack.c.l.b16 %v344
    %v394 = vunpack.c.h.b16 %v344
    %v395 = vunpack.c.l.b16 %v345
    %v396 = vunpack.c.h.b16 %v345
    %v397 = vunpack.c.l.b16 %v346
    %v398 = vunpack.c.h.b16 %v346
    %v399 = vunpack.c.l.b16 %v347
    %v400 = vunpack.c.h.b16 %v347
    %v401 = vunpack.c.l.b16 %v348
    %v402 = vunpack.c.h.b16 %v348
    %v403 = vunpack.c.l.b16 %v349
    %v404 = vunpack.c.h.b16 %v349
    %v405 = vunpack.c.l.b16 %v350
    %v406 = vunpack.c.h.b16 %v350
    %v407 = vunpack.c.l.b16 %v351
    %v408 = vunpack.c.h.b16 %v351
    %v409 = vunpack.c.l.b16 %v352
    %v410 = vunpack.c.h.b16 %v352
    %v411 = vunpack.c.l.b16 %v353
    %v412 = vunpack.c.h.b16 %v353
    %v413 = vunpack.c.l.b16 %v354
    %v414 = vunpack.c.h.b16 %v354
    %v415 = vpack.c.b16 %v385, %v383
    %v416 = vpack.c.b16 %v386, %v384
    %v417 = vpack.c.b16 %v389, %v387
    %v418 = vpack.c.b16 %v390, %v388
    %v419 = vpack.c.b16 %v393, %v391
    %v420 = vpack.c.b16 %v394, %v392
    %v421 = vpack.c.b16 %v397, %v395
    %v422 = vpack.c.b16 %v398, %v396
    %v423 = vpack.c.b16 %v401, %v399
    %v424 = vpack.c.b16 %v402, %v400
    %v425 = vpack.c.b16 %v405, %v403
    %v426 = vpack.c.b16 %v406, %v404
    %v427 = vpack.c.b16 %v409, %v407
    %v428 = vpack.c.b16 %v410, %v408
    %v429 = vpack.c.b16 %v413, %v411
    %v430 = vpack.c.b16 %v414, %v412
    %447 = vmatprep.subr.bf16.mxu0 %v430
    %448 = vmatpush1.bf16.msra.mxu0 %v429
    %449 = vmatprep.subr.bf16.mxu0 %v428
    %450 = vmatpush1.bf16.msra.mxu0 %v427
    %451 = vmatprep.subr.bf16.mxu0 %v426
    %452 = vmatpush1.bf16.msra.mxu0 %v425
    %453 = vmatprep.subr.bf16.mxu0 %v424
    %454 = vmatpush1.bf16.msra.mxu0 %v423
    %455 = vmatprep.subr.bf16.mxu0 %v422
    %456 = vmatpush1.bf16.msra.mxu0 %v421
    %457 = vmatprep.subr.bf16.mxu0 %v420
    %458 = vmatpush1.bf16.msra.mxu0 %v419
    %459 = vmatprep.subr.bf16.mxu0 %v418
    %460 = vmatpush1.bf16.msra.mxu0 %v417
    %461 = vmatprep.subr.bf16.mxu0 %v416
    %462 = vmatpush1.bf16.msra.mxu0 %v415
    %463 = vmatprep.subr.bf16.mxu0 0
    %464 = vmatpush2.bf16.msra.mxu0 0
    %465 = vmatprep.subr.bf16.mxu0 0
    %466 = vmatpush2.bf16.msra.mxu0 0
    %467 = vmatprep.subr.bf16.mxu0 0
    %468 = vmatpush2.bf16.msra.mxu0 0
    %469 = vmatprep.subr.bf16.mxu0 0
    %470 = vmatpush2.bf16.msra.mxu0 0
    %471 = vmatprep.subr.bf16.mxu0 0
    %472 = vmatpush2.bf16.msra.mxu0 0
    %473 = vmatprep.subr.bf16.mxu0 0
    %474 = vmatpush2.bf16.msra.mxu0 0
    %475 = vmatprep.subr.bf16.mxu0 0
    %476 = vmatpush2.bf16.msra.mxu0 0
    %477 = vmatprep.subr.bf16.mxu0 0
    %478 = vmatpush2.bf16.msra.mxu0 0
    %479 = vmatprep.mubr.bf16.mxu0 0
    %480 = vmatmul.mubr.bf16.gmra.mxu0 %v338
    %v481 = vpop.f32.mrf.mxu0
    %v482 = vadd.f32 %v360, %v481
    %v483 = vpop.f32.mrf.mxu0
    %v484 = vadd.f32 %v364, %v483
    %v485 = vpop.f32.mrf.mxu0
    %v486 = vadd.f32 %v360, %v485
    %v487 = vpop.f32.mrf.mxu0
    %v488 = vadd.f32 %v364, %v487
    %489 = vdwg.mxu0
    %490 = vst [vmem:[#allocation2] sm:$0xff] %v482
    %491 = vst [vmem:[#allocation2 + $0x8] sm:$0xff] %v484
    %492 = vst [vmem:[#allocation2 + $0x10] sm:$0xff] %v486
    %493 = vst [vmem:[#allocation2 + $0x18] sm:$0xff] %v488
    %v494 = vlaneseq
    %v495 = vand.u32 %v494, 127
    %v496 = vand.u32 %v495, 3
    %vm497 = vcmp.lt.s32.totalorder %v496, 2
    %v498 = vand.u32 %v496, 1
    %vm499 = vcmp.eq.s32.totalorder %v498, 0
    %vm500 = vcmp.eq.s32.totalorder %v496, 0
    %vm501 = vcmp.eq.s32.totalorder %v496, 1
    %v502 = vsel %vm501, 0.05, 0.1
    %v503 = vsel %vm500, 0.05, %v502
    %v504 = vmul.f32 %v484, %v503
    %v505 = vmul.f32 %v488, %v503
    %v506 = vld [vmem:[%s1] sm:$0xff]
    %v507 = vld [vmem:[%s1 + $0x8] sm:$0xff]
    %510 = vrot.lane.b32.xlu0 %v506, 2
    %v511 = vpop.permute.xlu0 %510
    %512 = vrot.lane.b32.xlu0 %v507, 2
    %v513 = vpop.permute.xlu0 %512
    %v516 = vsub.f32 %v506, %v511
    %v517 = vsub.f32 %v507, %v513
    %v518 = vadd.f32 %v516, 1.0
    %v519 = vadd.f32 %v517, 1.0
    %v520 = vmul.f32 %v518, 0.5
    %v521 = vmul.f32 %v519, 0.5
    %524 = vrot.lane.b32.xlu0 %v520, 126
    %v525 = vpop.permute.xlu0 %524
    %526 = vrot.lane.b32.xlu0 %v521, 126
    %v527 = vpop.permute.xlu0 %526
    %v530 = vadd.f32 %v506, %v525
    %v531 = vadd.f32 %v507, %v527
    %v532 = vsel %vm499, 1, 0
    %vm533 = vcmp.eq.s32.totalorder %v532, 1
    %535 = vset.pattern.permute.xlu0 2
    %536 = vperm.xlu0 %535, %v518
    %v537 = vpop.permute.xlu0 %536
    %540 = vset.pattern.permute.xlu0 2
    %541 = vperm.xlu0 %540, %v519
    %v542 = vpop.permute.xlu0 %541
    %544 = vset.pattern.permute.xlu0 3
    %545 = vperm.xlu0 %544, %v518
    %v546 = vpop.permute.xlu0 %545
    %548 = vset.pattern.permute.xlu0 3
    %549 = vperm.xlu0 %548, %v519
    %v550 = vpop.permute.xlu0 %549
    %v552 = vsel %vm533, %v537, %v546
    %v553 = vsel %vm533, %v542, %v550
    %555 = vset.pattern.permute.xlu0 0
    %556 = vperm.xlu0 %555, %v530
    %v557 = vpop.permute.xlu0 %556
    %560 = vset.pattern.permute.xlu0 0
    %561 = vperm.xlu0 %560, %v531
    %v562 = vpop.permute.xlu0 %561
    %564 = vset.pattern.permute.xlu0 1
    %565 = vperm.xlu0 %564, %v530
    %v566 = vpop.permute.xlu0 %565
    %568 = vset.pattern.permute.xlu0 1
    %569 = vperm.xlu0 %568, %v531
    %v570 = vpop.permute.xlu0 %569
    %v572 = vsel %vm533, %v557, %v566
    %v573 = vsel %vm533, %v562, %v570
    %574 = vrot.lane.b32.xlu0 %v504, 2
    %v575 = vpop.permute.xlu0 %574
    %576 = vrot.lane.b32.xlu0 %v505, 2
    %v577 = vpop.permute.xlu0 %576
    %v578 = vsel %vm497, 1, 0
    %vm579 = vcmp.eq.s32.totalorder %v578, 1
    %v580 = vsel %vm579, %v504, %v575
    %v581 = vsel %vm579, %v505, %v577
    %582 = vrot.lane.b32.xlu0 %v504, 126
    %v583 = vpop.permute.xlu0 %582
    %584 = vrot.lane.b32.xlu0 %v505, 126
    %v585 = vpop.permute.xlu0 %584
    %v586 = vsel %vm579, %v583, %v504
    %v587 = vsel %vm579, %v585, %v505
    %v588 = vmin.f32 %v586, 4.1351666
    %v589 = vmin.f32 %v587, 4.1351666
    %v590 = vmul.f32 %v580, %v552
    %v591 = vmul.f32 %v581, %v553
    %v592 = vadd.f32 %v590, %v572
    %v593 = vadd.f32 %v591, %v573
    %v594 = vmul.f32 %v588, 1.442695
    %v595 = vpow.pop %v594
    %v596 = vmul.f32 %v589, 1.442695
    %v597 = vpow.pop %v596
    %v598 = vmul.f32 %v595, 0.5
    %v599 = vmul.f32 %v597, 0.5
    %v600 = vmul.f32 %v598, %v552
    %v601 = vmul.f32 %v599, %v553
    %v602 = vsub.f32 %v592, %v600
    %v603 = vsub.f32 %v593, %v601
    %v604 = vadd.f32 %v592, %v600
    %v605 = vadd.f32 %v593, %v601
    %v606 = vsub.f32 %v604, 1.0
    %v607 = vsub.f32 %v605, 1.0
    %v608 = vsel %vm579, %v602, %v606
    %v609 = vsel %vm579, %v603, %v607
    %v610 = vmax.f32 %v608, 0.0
    %v611 = vmax.f32 %v609, 0.0
    %v612 = vmin.f32 %v610, 63.0
    %v613 = vmin.f32 %v611, 63.0
    %614 = vst [vmem:[%s9] sm:$0xff] %v612
    %615 = vst [vmem:[%s9 + $0x8] sm:$0xff] %v613
    // Predicated region
    $region34: #{roi_box_cascade_head_forward.4} parent=1 // pred_check
      _
    $region35: #{roi_box_cascade_head_forward.4} parent=1 // pred_check_branch
      %617 = sbr.rel (0) target = $region37
    $region36: #{roi_box_cascade_head_forward.4} parent=1 // pred_region
      %s619 = ssub.s32 512, 512
      %620 = vsyncadd [#allocation3], %s619
      %s621 = sshll.u32 [#allocation2], 4
      %s622 = int_to_ptr.vmem [resolvable:$true] %s621
      %627 = dma.vmem_to_hbm [thread:$0]  %s622, 512, %s8, [#allocation3], 256, 256, 16
    $region37: #{roi_box_cascade_head_forward.4} parent=1 // pred_fallthru
      _
    // Predicated region
    $region38: #{roi_box_cascade_head_forward.4} parent=1 // pred_check
      _
    $region39: #{roi_box_cascade_head_forward.4} parent=1 // pred_check_branch
      %629 = sbr.rel (0) target = $region41
    $region40: #{roi_box_cascade_head_forward.4} parent=1 // pred_region
      _
    $region41: #{roi_box_cascade_head_forward.4} parent=1 // pred_fallthru
      _
    // Predicated region
    $region42: #{roi_box_cascade_head_forward.4} parent=1 // pred_check
      _
    $region43: #{roi_box_cascade_head_forward.4} parent=1 // pred_check_branch
      %631 = sbr.rel (0) target = $region45
    $region44: #{roi_box_cascade_head_forward.4} parent=1 // pred_region
      %632 = dma.done [#allocation3], 512
    $region45: #{roi_box_cascade_head_forward.4} parent=1 // pred_fallthru
      _
    // Predicated region
    $region46: #{roi_box_cascade_head_forward.4} parent=1 // pred_check
      _
    $region47: #{roi_box_cascade_head_forward.4} parent=1 // pred_check_branch
      %634 = sbr.rel (0) target = $region49
    $region48: #{roi_box_cascade_head_forward.4} parent=1 // pred_region
      _
    $region49: #{roi_box_cascade_head_forward.4} parent=1 // pred_fallthru
      _
    %635 = vsyncpa [#allocation3], 1

// kernel: roi_box_cascade_head_forward.5
$region0: #{roi_box_cascade_head_forward.5}
  #allocation0 [shape = 'u32[]', space=smem, size = 0x4, offset = 0x4, fixed_abs, tag = 'smem constant byte address 0x4 - core index']
  #allocation1 [shape = 'u32[144,128]{1,0:T(1,128)}', space=vmem, size = 0x12000, scoped, tag = 'internal scratch']
  %s0 = inlined_call_operand.vmem [shape: bf16[16,256], index: 0, kind: input, shape index: {}]
  %s1 = inlined_call_operand.vmem [shape: f32[16,4], index: 1, kind: input, shape index: {}]
  %s2 = inlined_call_operand.vmem [shape: bf16[256,128], index: 2, kind: input, shape index: {}]
  %s3 = inlined_call_operand.vmem [shape: f32[1,128], index: 3, kind: input, shape index: {}]
  %s4 = inlined_call_operand.vmem [shape: bf16[128,128], index: 4, kind: input, shape index: {}]
  %s5 = inlined_call_operand.vmem [shape: f32[1,128], index: 5, kind: input, shape index: {}]
  %s6 = inlined_call_operand.vmem [shape: bf16[128,256], index: 6, kind: input, shape index: {}]
  %s7 = inlined_call_operand.vmem [shape: f32[1,256], index: 7, kind: input, shape index: {}]
  %s8 = inlined_call_operand.vmem [shape: f32[16,256], index: 8, kind: output, shape index: {0}]
  %s9 = inlined_call_operand.vmem [shape: f32[16,128], index: 9, kind: output, shape index: {1}]
  %10 = xla_tuple %s8, %s9
  %s11 = sld [smem:[#allocation0]]
  $region50: #{roi_box_cascade_head_forward.5} parent=0
    _
  %s13 = ssub.s32 1, %s11
  %s14 = scalar_select 0, %s13, %s11
  // Predicated region
  $region2: #{roi_box_cascade_head_forward.5} parent=0 // pred_check
    _
  $region3: #{roi_box_cascade_head_forward.5} parent=0 // pred_check_branch
    %16 = sbr.rel (0) target = $region5
  $region4: #{roi_box_cascade_head_forward.5} parent=0 // pred_region
    _
  $region5: #{roi_box_cascade_head_forward.5} parent=0 // pred_fallthru
    _
  // Predicated region
  $region6: #{roi_box_cascade_head_forward.5} parent=0 // pred_check
    _
  $region7: #{roi_box_cascade_head_forward.5} parent=0 // pred_check_branch
    %18 = sbr.rel (0) target = $region9
  $region8: #{roi_box_cascade_head_forward.5} parent=0 // pred_region
    _
  $region9: #{roi_box_cascade_head_forward.5} parent=0 // pred_fallthru
    _
  // Predicated region
  $region10: #{roi_box_cascade_head_forward.5} parent=0 // pred_check
    _
  $region11: #{roi_box_cascade_head_forward.5} parent=0 // pred_check_branch
    %20 = sbr.rel (0) target = $region13
  $region12: #{roi_box_cascade_head_forward.5} parent=0 // pred_region
    _
  $region13: #{roi_box_cascade_head_forward.5} parent=0 // pred_fallthru
    _
  // Predicated region
  $region14: #{roi_box_cascade_head_forward.5} parent=0 // pred_check
    _
  $region15: #{roi_box_cascade_head_forward.5} parent=0 // pred_check_branch
    %22 = sbr.rel (0) target = $region17
  $region16: #{roi_box_cascade_head_forward.5} parent=0 // pred_region
    _
  $region17: #{roi_box_cascade_head_forward.5} parent=0 // pred_fallthru
    _
  // Predicated region
  $region18: #{roi_box_cascade_head_forward.5} parent=0 // pred_check
    _
  $region19: #{roi_box_cascade_head_forward.5} parent=0 // pred_check_branch
    %24 = sbr.rel (0) target = $region21
  $region20: #{roi_box_cascade_head_forward.5} parent=0 // pred_region
    _
  $region21: #{roi_box_cascade_head_forward.5} parent=0 // pred_fallthru
    _
  // Predicated region
  $region22: #{roi_box_cascade_head_forward.5} parent=0 // pred_check
    _
  $region23: #{roi_box_cascade_head_forward.5} parent=0 // pred_check_branch
    %26 = sbr.rel (0) target = $region25
  $region24: #{roi_box_cascade_head_forward.5} parent=0 // pred_region
    _
  $region25: #{roi_box_cascade_head_forward.5} parent=0 // pred_fallthru
    _
  // Predicated region
  $region26: #{roi_box_cascade_head_forward.5} parent=0 // pred_check
    _
  $region27: #{roi_box_cascade_head_forward.5} parent=0 // pred_check_branch
    %28 = sbr.rel (0) target = $region29
  $region28: #{roi_box_cascade_head_forward.5} parent=0 // pred_region
    _
  $region29: #{roi_box_cascade_head_forward.5} parent=0 // pred_fallthru
    _
  // Predicated region
  $region30: #{roi_box_cascade_head_forward.5} parent=0 // pred_check
    _
  $region31: #{roi_box_cascade_head_forward.5} parent=0 // pred_check_branch
    %30 = sbr.rel (0) target = $region33
  $region32: #{roi_box_cascade_head_forward.5} parent=0 // pred_region
    _
  $region33: #{roi_box_cascade_head_forward.5} parent=0 // pred_fallthru
    _
  %v32 = vld [vmem:[%s0] sm:$0xff]
  %v33 = vld [vmem:[%s0 + $0x8] sm:$0xff]
  %v34 = vld [vmem:[%s2] sm:$0xf]
  %v35 = vld [vmem:[%s2 + $0x4] sm:$0xf]
  %v36 = vld [vmem:[%s2 + $0x8] sm:$0xf]
  %v37 = vld [vmem:[%s2 + $0xc] sm:$0xf]
  %v38 = vld [vmem:[%s2 + $0x10] sm:$0xf]
  %v39 = vld [vmem:[%s2 + $0x14] sm:$0xf]
  %v40 = vld [vmem:[%s2 + $0x18] sm:$0xf]
  %v41 = vld [vmem:[%s2 + $0x1c] sm:$0xf]
  %v42 = vld [vmem:[%s2 + $0x20] sm:$0xf]
  %v43 = vld [vmem:[%s2 + $0x24] sm:$0xf]
  %v44 = vld [vmem:[%s2 + $0x28] sm:$0xf]
  %v45 = vld [vmem:[%s2 + $0x2c] sm:$0xf]
  %v46 = vld [vmem:[%s2 + $0x30] sm:$0xf]
  %v47 = vld [vmem:[%s2 + $0x34] sm:$0xf]
  %v48 = vld [vmem:[%s2 + $0x38] sm:$0xf]
  %v49 = vld [vmem:[%s2 + $0x3c] sm:$0xf]
  %v50 = vld [vmem:[%s2 + $0x40] sm:$0xf]
  %v51 = vld [vmem:[%s2 + $0x44] sm:$0xf]
  %v52 = vld [vmem:[%s2 + $0x48] sm:$0xf]
  %v53 = vld [vmem:[%s2 + $0x4c] sm:$0xf]
  %v54 = vld [vmem:[%s2 + $0x50] sm:$0xf]
  %v55 = vld [vmem:[%s2 + $0x54] sm:$0xf]
  %v56 = vld [vmem:[%s2 + $0x58] sm:$0xf]
  %v57 = vld [vmem:[%s2 + $0x5c] sm:$0xf]
  %v58 = vld [vmem:[%s2 + $0x60] sm:$0xf]
  %v59 = vld [vmem:[%s2 + $0x64] sm:$0xf]
  %v60 = vld [vmem:[%s2 + $0x68] sm:$0xf]
  %v61 = vld [vmem:[%s2 + $0x6c] sm:$0xf]
  %v62 = vld [vmem:[%s2 + $0x70] sm:$0xf]
  %v63 = vld [vmem:[%s2 + $0x74] sm:$0xf]
  %v64 = vld [vmem:[%s2 + $0x78] sm:$0xf]
  %v65 = vld [vmem:[%s2 + $0x7c] sm:$0xf]
  %v66 = vld [vmem:[%s3] sm:$0x1]
  %v68 = vlaneseq
  %v69 = vshrl.u32 %v68, 7
  %v70 = vsub.s32 0, %v69
  %v71 = vrot.slane %v66, %v70
  %v75 = vunpack.c.l.b16 %v32
  %v76 = vunpack.c.h.b16 %v32
  %v77 = vunpack.c.l.b16 %v33
  %v78 = vunpack.c.h.b16 %v33
  %v79 = vpack.c.b16 %v77, %v75
  %v80 = vpack.c.b16 %v78, %v76
  %v115 = vunpack.c.l.b16 %v34
  %v116 = vunpack.c.l.b16 %v35
  %v117 = vunpack.c.l.b16 %v36
  %v118 = vunpack.c.l.b16 %v37
  %v119 = vunpack.c.l.b16 %v38
  %v120 = vunpack.c.l.b16 %v39
  %v121 = vunpack.c.l.b16 %v40
  %v122 = vunpack.c.l.b16 %v41
  %v123 = vunpack.c.l.b16 %v42
  %v124 = vunpack.c.l.b16 %v43
  %v125 = vunpack.c.l.b16 %v44
  %v126 = vunpack.c.l.b16 %v45
  %v127 = vunpack.c.l.b16 %v46
  %v128 = vunpack.c.l.b16 %v47
  %v129 = vunpack.c.l.b16 %v48
  %v130 = vunpack.c.l.b16 %v49
  %v131 = vunpack.c.l.b16 %v50
  %v132 = vunpack.c.l.b16 %v51
  %v133 = vunpack.c.l.b16 %v52
  %v134 = vunpack.c.l.b16 %v53
  %v135 = vunpack.c.l.b16 %v54
  %v136 = vunpack.c.l.b16 %v55
  %v137 = vunpack.c.l.b16 %v56
  %v138 = vunpack.c.l.b16 %v57
  %v139 = vunpack.c.l.b16 %v58
  %v140 = vunpack.c.l.b16 %v59
  %v141 = vunpack.c.l.b16 %v60
  %v142 = vunpack.c.l.b16 %v61
  %v143 = vunpack.c.l.b16 %v62
  %v144 = vunpack.c.l.b16 %v63
  %v145 = vunpack.c.l.b16 %v64
  %v146 = vunpack.c.l.b16 %v65
  %v147 = vpack.c.b16 %v116, %v115
  %v148 = vpack.c.b16 %v118, %v117
  %v149 = vpack.c.b16 %v120, %v119
  %v150 = vpack.c.b16 %v122, %v121
  %v151 = vpack.c.b16 %v124, %v123
  %v152 = vpack.c.b16 %v126, %v125
  %v153 = vpack.c.b16 %v128, %v127
  %v154 = vpack.c.b16 %v130, %v129
  %v155 = vpack.c.b16 %v132, %v131
  %v156 = vpack.c.b16 %v134, %v133
  %v157 = vpack.c.b16 %v136, %v135
  %v158 = vpack.c.b16 %v138, %v137
  %v159 = vpack.c.b16 %v140, %v139
  %v160 = vpack.c.b16 %v142, %v141
  %v161 = vpack.c.b16 %v144, %v143
  %v162 = vpack.c.b16 %v146, %v145
  %179 = vmatprep.subr.bf16.mxu0 0
  %180 = vmatpush1.bf16.msra.mxu0 %v154
  %181 = vmatprep.subr.bf16.mxu0 0
  %182 = vmatpush1.bf16.msra.mxu0 %v153
  %183 = vmatprep.subr.bf16.mxu0 0
  %184 = vmatpush1.bf16.msra.mxu0 %v152
  %185 = vmatprep.subr.bf16.mxu0 0
  %186 = vmatpush1.bf16.msra.mxu0 %v151
  %187 = vmatprep.subr.bf16.mxu0 0
  %188 = vmatpush1.bf16.msra.mxu0 %v150
  %189 = vmatprep.subr.bf16.mxu0 0
  %190 = vmatpush1.bf16.msra.mxu0 %v149
  %191 = vmatprep.subr.bf16.mxu0 0
  %192 = vmatpush1.bf16.msra.mxu0 %v148
  %193 = vmatprep.subr.bf16.mxu0 0
  %194 = vmatpush1.bf16.msra.mxu0 %v147
  %195 = vmatprep.subr.bf16.mxu0 0
  %196 = vmatpush2.bf16.msra.mxu0 %v162
  %197 = vmatprep.subr.bf16.mxu0 0
  %198 = vmatpush2.bf16.msra.mxu0 %v161
  %199 = vmatprep.subr.bf16.mxu0 0
  %200 = vmatpush2.bf16.msra.mxu0 %v160
  %201 = vmatprep.subr.bf16.mxu0 0
  %202 = vmatpush2.bf16.msra.mxu0 %v159
  %203 = vmatprep.subr.bf16.mxu0 0
  %204 = vmatpush2.bf16.msra.mxu0 %v158
  %205 = vmatprep.subr.bf16.mxu0 0
  %206 = vmatpush2.bf16.msra.mxu0 %v157
  %207 = vmatprep.subr.bf16.mxu0 0
  %208 = vmatpush2.bf16.msra.mxu0 %v156
  %209 = vmatprep.subr.bf16.mxu0 0
  %210 = vmatpush2.bf16.msra.mxu0 %v155
  %211 = vmatprep.mubr.bf16.mxu0 %v80
  %212 = vmatmul.mubr.bf16.gmra.mxu0 %v79
  %v213 = vpop.f32.mrf.mxu0
  %v214 = vadd.f32 %v71, %v213
  %v215 = vpop.f32.mrf.mxu0
  %v216 = vpop.f32.mrf.mxu0
  %v217 = vadd.f32 %v71, %v216
  %v218 = vpop.f32.mrf.mxu0
  %219 = vdwg.mxu0
  %v220 = vmax.f32 %v214, 0.0
  %v221 = vmax.f32 %v217, 0.0
  %v222 = vpack.c.bf16 %v221, %v220
  %v223 = vld [vmem:[%s4] sm:$0xf]
  %v224 = vld [vmem:[%s4 + $0x4] sm:$0xf]
  %v225 = vld [vmem:[%s4 + $0x8] sm:$0xf]
  %v226 = vld [vmem:[%s4 + $0xc] sm:$0xf]
  %v227 = vld [vmem:[%s4 + $0x10] sm:$0xf]
  %v228 = vld [vmem:[%s4 + $0x14] sm:$0xf]
  %v229 = vld [vmem:[%s4 + $0x18] sm:$0xf]
  %v230 = vld [vmem:[%s4 + $0x1c] sm:$0xf]
  %v231 = vld [vmem:[%s4 + $0x20] sm:$0xf]
  %v232 = vld [vmem:[%s4 + $0x24] sm:$0xf]
  %v233 = vld [vmem:[%s4 + $0x28] sm:$0xf]
  %v234 = vld [vmem:[%s4 + $0x2c] sm:$0xf]
  %v235 = vld [vmem:[%s4 + $0x30] sm:$0xf]
  %v236 = vld [vmem:[%s4 + $0x34] sm:$0xf]
  %v237 = vld [vmem:[%s4 + $0x38] sm:$0xf]
  %v238 = vld [vmem:[%s4 + $0x3c] sm:$0xf]
  %v239 = vld [vmem:[%s5] sm:$0x1]
  %v241 = vlaneseq
  %v242 = vshrl.u32 %v241, 7
  %v243 = vsub.s32 0, %v242
  %v244 = vrot.slane %v239, %v243
  %v262 = vunpack.c.l.b16 %v223
  %v263 = vunpack.c.l.b16 %v224
  %v264 = vunpack.c.l.b16 %v225
  %v265 = vunpack.c.l.b16 %v226
  %v266 = vunpack.c.l.b16 %v227
  %v267 = vunpack.c.l.b16 %v228
  %v268 = vunpack.c.l.b16 %v229
  %v269 = vunpack.c.l.b16 %v230
  %v270 = vunpack.c.l.b16 %v231
  %v271 = vunpack.c.l.b16 %v232
  %v272 = vunpack.c.l.b16 %v233
  %v273 = vunpack.c.l.b16 %v234
  %v274 = vunpack.c.l.b16 %v235
  %v275 = vunpack.c.l.b16 %v236
  %v276 = vunpack.c.l.b16 %v237
  %v277 = vunpack.c.l.b16 %v238
  %v278 = vpack.c.b16 %v263, %v262
  %v279 = vpack.c.b16 %v265, %v264
  %v280 = vpack.c.b16 %v267, %v266
  %v281 = vpack.c.b16 %v269, %v268
  %v282 = vpack.c.b16 %v271, %v270
  %v283 = vpack.c.b16 %v273, %v272
  %v284 = vpack.c.b16 %v275, %v274
  %v285 = vpack.c.b16 %v277, %v276
  %294 = vmatprep.subr.bf16.mxu0 0
  %295 = vmatpush1.bf16.msra.mxu0 %v285
  %296 = vmatprep.subr.bf16.mxu0 0
  %297 = vmatpush1.bf16.msra.mxu0 %v284
  %298 = vmatprep.subr.bf16.mxu0 0
  %299 = vmatpush1.bf16.msra.mxu0 %v283
  %300 = vmatprep.subr.bf16.mxu0 0
  %301 = vmatpush1.bf16.msra.mxu0 %v282
  %302 = vmatprep.subr.bf16.mxu0 0
  %303 = vmatpush1.bf16.msra.mxu0 %v281
  %304 = vmatprep.subr.bf16.mxu0 0
  %305 = vmatpush1.bf16.msra.mxu0 %v280
  %306 = vmatprep.subr.bf16.mxu0 0
  %307 = vmatpush1.bf16.msra.mxu0 %v279
  %308 = vmatprep.subr.bf16.mxu0 0
  %309 = vmatpush1.bf16.msra.mxu0 %v278
  %310 = vmatprep.subr.bf16.mxu0 0
  %311 = vmatpush2.bf16.msra.mxu0 0
  %312 = vmatprep.subr.bf16.mxu0 0
  %313 = vmatpush2.bf16.msra.mxu0 0
  %314 = vmatprep.subr.bf16.mxu0 0
  %315 = vmatpush2.bf16.msra.mxu0 0
  %316 = vmatprep.subr.bf16.mxu0 0
  %317 = vmatpush2.bf16.msra.mxu0 0
  %318 = vmatprep.subr.bf16.mxu0 0
  %319 = vmatpush2.bf16.msra.mxu0 0
  %320 = vmatprep.subr.bf16.mxu0 0
  %321 = vmatpush2.bf16.msra.mxu0 0
  %322 = vmatprep.subr.bf16.mxu0 0
  %323 = vmatpush2.bf16.msra.mxu0 0
  %324 = vmatprep.subr.bf16.mxu0 0
  %325 = vmatpush2.bf16.msra.mxu0 0
  %326 = vmatprep.mubr.bf16.mxu0 0
  %327 = vmatmul.mubr.bf16.gmra.mxu0 %v222
  %v328 = vpop.f32.mrf.mxu0
  %v329 = vadd.f32 %v244, %v328
  %v330 = vpop.f32.mrf.mxu0
  %v331 = vpop.f32.mrf.mxu0
  %v332 = vadd.f32 %v244, %v331
  %v333 = vpop.f32.mrf.mxu0
  %334 = vdwg.mxu0
  %v335 = vmax.f32 %v329, 0.0
  %v336 = vmax.f32 %v332, 0.0
  %v337 = vpack.c.bf16 %v336, %v335
  %v338 = vld [vmem:[%s6] sm:$0xff]
  %v339 = vld [vmem:[%s6 + $0x8] sm:$0xff]
  %v340 = vld [vmem:[%s6 + $0x10] sm:$0xff]
  %v341 = vld [vmem:[%s6 + $0x18] sm:$0xff]
  %v342 = vld [vmem:[%s6 + $0x20] sm:$0xff]
  %v343 = vld [vmem:[%s6 + $0x28] sm:$0xff]
  %v344 = vld [vmem:[%s6 + $0x30] sm:$0xff]
  %v345 = vld [vmem:[%s6 + $0x38] sm:$0xff]
  %v346 = vld [vmem:[%s6 + $0x40] sm:$0xff]
  %v347 = vld [vmem:[%s6 + $0x48] sm:$0xff]
  %v348 = vld [vmem:[%s6 + $0x50] sm:$0xff]
  %v349 = vld [vmem:[%s6 + $0x58] sm:$0xff]
  %v350 = vld [vmem:[%s6 + $0x60] sm:$0xff]
  %v351 = vld [vmem:[%s6 + $0x68] sm:$0xff]
  %v352 = vld [vmem:[%s6 + $0x70] sm:$0xff]
  %v353 = vld [vmem:[%s6 + $0x78] sm:$0xff]
  %v354 = vld [vmem:[%s7] sm:$0x3]
  %v356 = vlaneseq
  %v357 = vshrl.u32 %v356, 7
  %v358 = vsub.s32 0, %v357
  %v359 = vrot.slane %v354, %v358
  %v360 = vlaneseq
  %v361 = vshrl.u32 %v360, 7
  %v362 = vsub.s32 1, %v361
  %v363 = vrot.slane %v354, %v362
  %v382 = vunpack.c.l.b16 %v338
  %v383 = vunpack.c.h.b16 %v338
  %v384 = vunpack.c.l.b16 %v339
  %v385 = vunpack.c.h.b16 %v339
  %v386 = vunpack.c.l.b16 %v340
  %v387 = vunpack.c.h.b16 %v340
  %v388 = vunpack.c.l.b16 %v341
  %v389 = vunpack.c.h.b16 %v341
  %v390 = vunpack.c.l.b16 %v342
  %v391 = vunpack.c.h.b16 %v342
  %v392 = vunpack.c.l.b16 %v343
  %v393 = vunpack.c.h.b16 %v343
  %v394 = vunpack.c.l.b16 %v344
  %v395 = vunpack.c.h.b16 %v344
  %v396 = vunpack.c.l.b16 %v345
  %v397 = vunpack.c.h.b16 %v345
  %v398 = vunpack.c.l.b16 %v346
  %v399 = vunpack.c.h.b16 %v346
  %v400 = vunpack.c.l.b16 %v347
  %v401 = vunpack.c.h.b16 %v347
  %v402 = vunpack.c.l.b16 %v348
  %v403 = vunpack.c.h.b16 %v348
  %v404 = vunpack.c.l.b16 %v349
  %v405 = vunpack.c.h.b16 %v349
  %v406 = vunpack.c.l.b16 %v350
  %v407 = vunpack.c.h.b16 %v350
  %v408 = vunpack.c.l.b16 %v351
  %v409 = vunpack.c.h.b16 %v351
  %v410 = vunpack.c.l.b16 %v352
  %v411 = vunpack.c.h.b16 %v352
  %v412 = vunpack.c.l.b16 %v353
  %v413 = vunpack.c.h.b16 %v353
  %v414 = vpack.c.b16 %v384, %v382
  %v415 = vpack.c.b16 %v385, %v383
  %v416 = vpack.c.b16 %v388, %v386
  %v417 = vpack.c.b16 %v389, %v387
  %v418 = vpack.c.b16 %v392, %v390
  %v419 = vpack.c.b16 %v393, %v391
  %v420 = vpack.c.b16 %v396, %v394
  %v421 = vpack.c.b16 %v397, %v395
  %v422 = vpack.c.b16 %v400, %v398
  %v423 = vpack.c.b16 %v401, %v399
  %v424 = vpack.c.b16 %v404, %v402
  %v425 = vpack.c.b16 %v405, %v403
  %v426 = vpack.c.b16 %v408, %v406
  %v427 = vpack.c.b16 %v409, %v407
  %v428 = vpack.c.b16 %v412, %v410
  %v429 = vpack.c.b16 %v413, %v411
  %446 = vmatprep.subr.bf16.mxu0 %v429
  %447 = vmatpush1.bf16.msra.mxu0 %v428
  %448 = vmatprep.subr.bf16.mxu0 %v427
  %449 = vmatpush1.bf16.msra.mxu0 %v426
  %450 = vmatprep.subr.bf16.mxu0 %v425
  %451 = vmatpush1.bf16.msra.mxu0 %v424
  %452 = vmatprep.subr.bf16.mxu0 %v423
  %453 = vmatpush1.bf16.msra.mxu0 %v422
  %454 = vmatprep.subr.bf16.mxu0 %v421
  %455 = vmatpush1.bf16.msra.mxu0 %v420
  %456 = vmatprep.subr.bf16.mxu0 %v419
  %457 = vmatpush1.bf16.msra.mxu0 %v418
  %458 = vmatprep.subr.bf16.mxu0 %v417
  %459 = vmatpush1.bf16.msra.mxu0 %v416
  %460 = vmatprep.subr.bf16.mxu0 %v415
  %461 = vmatpush1.bf16.msra.mxu0 %v414
  %462 = vmatprep.subr.bf16.mxu0 0
  %463 = vmatpush2.bf16.msra.mxu0 0
  %464 = vmatprep.subr.bf16.mxu0 0
  %465 = vmatpush2.bf16.msra.mxu0 0
  %466 = vmatprep.subr.bf16.mxu0 0
  %467 = vmatpush2.bf16.msra.mxu0 0
  %468 = vmatprep.subr.bf16.mxu0 0
  %469 = vmatpush2.bf16.msra.mxu0 0
  %470 = vmatprep.subr.bf16.mxu0 0
  %471 = vmatpush2.bf16.msra.mxu0 0
  %472 = vmatprep.subr.bf16.mxu0 0
  %473 = vmatpush2.bf16.msra.mxu0 0
  %474 = vmatprep.subr.bf16.mxu0 0
  %475 = vmatpush2.bf16.msra.mxu0 0
  %476 = vmatprep.subr.bf16.mxu0 0
  %477 = vmatpush2.bf16.msra.mxu0 0
  %478 = vmatprep.mubr.bf16.mxu0 0
  %479 = vmatmul.mubr.bf16.gmra.mxu0 %v337
  %v480 = vpop.f32.mrf.mxu0
  %v481 = vadd.f32 %v359, %v480
  %v482 = vpop.f32.mrf.mxu0
  %v483 = vadd.f32 %v363, %v482
  %v484 = vpop.f32.mrf.mxu0
  %v485 = vadd.f32 %v359, %v484
  %v486 = vpop.f32.mrf.mxu0
  %v487 = vadd.f32 %v363, %v486
  %488 = vdwg.mxu0
  %489 = vst [vmem:[%s8] sm:$0xff] %v481
  %490 = vst [vmem:[%s8 + $0x8] sm:$0xff] %v483
  %491 = vst [vmem:[%s8 + $0x10] sm:$0xff] %v485
  %492 = vst [vmem:[%s8 + $0x18] sm:$0xff] %v487
  %v493 = vlaneseq
  %v494 = vand.u32 %v493, 127
  %v495 = vand.u32 %v494, 3
  %vm496 = vcmp.lt.s32.totalorder %v495, 2
  %v497 = vand.u32 %v495, 1
  %vm498 = vcmp.eq.s32.totalorder %v497, 0
  %vm499 = vcmp.eq.s32.totalorder %v495, 0
  %vm500 = vcmp.eq.s32.totalorder %v495, 1
  %v501 = vsel %vm500, 0.033333335, 0.06666667
  %v502 = vsel %vm499, 0.033333335, %v501
  %v503 = vmul.f32 %v483, %v502
  %v504 = vmul.f32 %v487, %v502
  %v505 = vld [vmem:[%s1] sm:$0xff]
  %v506 = vld [vmem:[%s1 + $0x8] sm:$0xff]
  %509 = vrot.lane.b32.xlu0 %v505, 2
  %v510 = vpop.permute.xlu0 %509
  %511 = vrot.lane.b32.xlu0 %v506, 2
  %v512 = vpop.permute.xlu0 %511
  %v515 = vsub.f32 %v505, %v510
  %v516 = vsub.f32 %v506, %v512
  %v517 = vadd.f32 %v515, 1.0
  %v518 = vadd.f32 %v516, 1.0
  %v519 = vmul.f32 %v517, 0.5
  %v520 = vmul.f32 %v518, 0.5
  %523 = vrot.lane.b32.xlu0 %v519, 126
  %v524 = vpop.permute.xlu0 %523
  %525 = vrot.lane.b32.xlu0 %v520, 126
  %v526 = vpop.permute.xlu0 %525
  %v529 = vadd.f32 %v505, %v524
  %v530 = vadd.f32 %v506, %v526
  %v531 = vsel %vm498, 1, 0
  %vm532 = vcmp.eq.s32.totalorder %v531, 1
  %534 = vset.pattern.permute.xlu0 2
  %535 = vperm.xlu0 %534, %v517
  %v536 = vpop.permute.xlu0 %535
  %539 = vset.pattern.permute.xlu0 2
  %540 = vperm.xlu0 %539, %v518
  %v541 = vpop.permute.xlu0 %540
  %543 = vset.pattern.permute.xlu0 3
  %544 = vperm.xlu0 %543, %v517
  %v545 = vpop.permute.xlu0 %544
  %547 = vset.pattern.permute.xlu0 3
  %548 = vperm.xlu0 %547, %v518
  %v549 = vpop.permute.xlu0 %548
  %v551 = vsel %vm532, %v536, %v545
  %v552 = vsel %vm532, %v541, %v549
  %554 = vset.pattern.permute.xlu0 0
  %555 = vperm.xlu0 %554, %v529
  %v556 = vpop.permute.xlu0 %555
  %559 = vset.pattern.permute.xlu0 0
  %560 = vperm.xlu0 %559, %v530
  %v561 = vpop.permute.xlu0 %560
  %563 = vset.pattern.permute.xlu0 1
  %564 = vperm.xlu0 %563, %v529
  %v565 = vpop.permute.xlu0 %564
  %567 = vset.pattern.permute.xlu0 1
  %568 = vperm.xlu0 %567, %v530
  %v569 = vpop.permute.xlu0 %568
  %v571 = vsel %vm532, %v556, %v565
  %v572 = vsel %vm532, %v561, %v569
  %573 = vrot.lane.b32.xlu0 %v503, 2
  %v574 = vpop.permute.xlu0 %573
  %575 = vrot.lane.b32.xlu0 %v504, 2
  %v576 = vpop.permute.xlu0 %575
  %v577 = vsel %vm496, 1, 0
  %vm578 = vcmp.eq.s32.totalorder %v577, 1
  %v579 = vsel %vm578, %v503, %v574
  %v580 = vsel %vm578, %v504, %v576
  %581 = vrot.lane.b32.xlu0 %v503, 126
  %v582 = vpop.permute.xlu0 %581
  %583 = vrot.lane.b32.xlu0 %v504, 126
  %v584 = vpop.permute.xlu0 %583
  %v585 = vsel %vm578, %v582, %v503
  %v586 = vsel %vm578, %v584, %v504
  %v587 = vmin.f32 %v585, 4.1351666
  %v588 = vmin.f32 %v586, 4.1351666
  %v589 = vmul.f32 %v579, %v551
  %v590 = vmul.f32 %v580, %v552
  %v591 = vadd.f32 %v589, %v571
  %v592 = vadd.f32 %v590, %v572
  %v593 = vmul.f32 %v587, 1.442695
  %v594 = vpow.pop %v593
  %v595 = vmul.f32 %v588, 1.442695
  %v596 = vpow.pop %v595
  %v597 = vmul.f32 %v594, 0.5
  %v598 = vmul.f32 %v596, 0.5
  %v599 = vmul.f32 %v597, %v551
  %v600 = vmul.f32 %v598, %v552
  %v601 = vsub.f32 %v591, %v599
  %v602 = vsub.f32 %v592, %v600
  %v603 = vadd.f32 %v591, %v599
  %v604 = vadd.f32 %v592, %v600
  %v605 = vsub.f32 %v603, 1.0
  %v606 = vsub.f32 %v604, 1.0
  %v607 = vsel %vm578, %v601, %v605
  %v608 = vsel %vm578, %v602, %v606
  %v609 = vmax.f32 %v607, 0.0
  %v610 = vmax.f32 %v608, 0.0
  %v611 = vmin.f32 %v609, 63.0
  %v612 = vmin.f32 %v610, 63.0
  %613 = vst [vmem:[%s9] sm:$0xff] %v611
  %614 = vst [vmem:[%s9 + $0x8] sm:$0xff] %v612
  // Predicated region
  $region34: #{roi_box_cascade_head_forward.5} parent=0 // pred_check
    _
  $region35: #{roi_box_cascade_head_forward.5} parent=0 // pred_check_branch
    %616 = sbr.rel (0) target = $region37
  $region36: #{roi_box_cascade_head_forward.5} parent=0 // pred_region
    _
  $region37: #{roi_box_cascade_head_forward.5} parent=0 // pred_fallthru
    _
  // Predicated region
  $region38: #{roi_box_cascade_head_forward.5} parent=0 // pred_check
    _
  $region39: #{roi_box_cascade_head_forward.5} parent=0 // pred_check_branch
    %618 = sbr.rel (0) target = $region41
  $region40: #{roi_box_cascade_head_forward.5} parent=0 // pred_region
    _
  $region41: #{roi_box_cascade_head_forward.5} parent=0 // pred_fallthru
    _
  // Predicated region
  $region42: #{roi_box_cascade_head_forward.5} parent=0 // pred_check
    _
  $region43: #{roi_box_cascade_head_forward.5} parent=0 // pred_check_branch
    %620 = sbr.rel (0) target = $region45
  $region44: #{roi_box_cascade_head_forward.5} parent=0 // pred_region
    _
  $region45: #{roi_box_cascade_head_forward.5} parent=0 // pred_fallthru
    _
  // Predicated region
  $region46: #{roi_box_cascade_head_forward.5} parent=0 // pred_check
    _
  $region47: #{roi_box_cascade_head_forward.5} parent=0 // pred_check_branch
    %622 = sbr.rel (0) target = $region49
  $region48: #{roi_box_cascade_head_forward.5} parent=0 // pred_region
    _
  $region49: #{roi_box_cascade_head_forward.5} parent=0 // pred_fallthru
    _

</llo_original>
